<compile_context>
chip_gen: v6e
topology: v6e:2x2x1
jax: 0.10.0
libtpu: 0.0.40
codegen_flags: <defaults>
</compile_context>

<pallas_src>
import functools

import jax
import jax.numpy as jnp
from jax.experimental import pallas as pl
from jax.experimental.pallas import tpu as pltpu


def _make_row_toeplitz(w_hwio, W, padding):
    """Conv weights (KH, KW, Ci, Co) -> row block-Toeplitz (KH, W*Ci, W*Co).

    Width padding is folded in:
      T[kh, wi*Ci + ci, wo*Co + co] = w[kh, wi - wo + p, ci, co]
                                      if 0 <= wi - wo + p < KW else 0,
    so an UNPADDED input row-slab (N*H, W*Ci) @ T[kh] accumulates the kh-tap
    of the "same"-padded convolution for a whole output row, lane-dense in
    (w, co).  Only a vertical halo remains to be handled by the caller.
    """
    KH, KW, Ci, Co = w_hwio.shape
    wi = jnp.arange(W)[:, None]                 # input column (unpadded)
    wo = jnp.arange(W)[None, :]                 # output column
    kw = wi - wo + padding                      # (W, W) horizontal tap index
    valid = (kw >= 0) & (kw < KW)
    kw_c = jnp.clip(kw, 0, KW - 1)
    t = w_hwio[:, kw_c, :, :]                   # (KH, W, W, Ci, Co)
    t = jnp.where(valid[None, :, :, None, None], t, 0.0)
    t = jnp.transpose(t, (0, 1, 3, 2, 4))       # (KH, W, Ci, W, Co)
    return t.reshape(KH, W * Ci, W * Co).astype(jnp.float32)


def _fused_kernel(x_ref, t1_ref, t2_ref, sum_ref, bc_ref, gb_ref,
                  o_ref, xpad_ref, ypad_ref,
                  *, N, H, W, Cin, Cout, KH, p, eps):
    """Fused (conv -> train-mode BN -> ReLU) x 2, whole problem in VMEM."""
    inv_count = 1.0 / float(N * H * W)

    def conv_rows(xp, t_ref, Ci):
        # xp: padded slab VALUE (N, H+2p, W*Ci), bf16 (loaded once per stage).
        # sum over KH of (N*H, W*Ci) @ (W*Ci, W*Cout), f32 accumulation.
        acc = jnp.zeros((N * H, W * Cout), jnp.float32)
        for kh in range(KH):                                   # static unroll
            xk = xp[:, kh:kh + H, :].reshape(N * H, W * Ci)
            acc = acc + jnp.dot(xk, t_ref[kh],
                                preferred_element_type=jnp.float32)
        return acc

    def bn_relu(acc):
        # One stacked aggregation matmul: [col_sum; col_sqsum] -> per-channel
        # [sum; sum_sq] (one-hot, exact).  Then per-channel scale/bias at Cout
        # width, and ONE broadcast matmul back to the lane-dense layout.
        sums = jnp.concatenate(
            [jnp.sum(acc, axis=0, keepdims=True),
             jnp.sum(acc * acc, axis=0, keepdims=True)], axis=0)   # (2, W*Cout)
        stats_c = jnp.dot(sums, sum_ref[...],
                          preferred_element_type=jnp.float32) * inv_count  # (2, Cout)
        mean_c = stats_c[0:1, :]
        var_c = stats_c[1:2, :] - mean_c * mean_c                  # biased var
        scale_c = gb_ref[0:1, :] * jax.lax.rsqrt(var_c + eps)      # gamma/std
        bias_c = gb_ref[1:2, :] - mean_c * scale_c                 # beta - mu*s
        sb_l = jnp.dot(jnp.concatenate([scale_c, bias_c], axis=0), bc_ref[...],
                       preferred_element_type=jnp.float32)         # (2, W*Cout)
        return jnp.maximum(acc * sb_l[0:1, :] + sb_l[1:2, :], 0.0)  # ReLU

    # ---- stage 1: vertical-halo slab (lane-aligned stores, halo-only zero) --
    if p > 0:
        xpad_ref[:, :p, :] = jnp.zeros((N, p, W * Cin), xpad_ref.dtype)
        xpad_ref[:, p + H:, :] = jnp.zeros((N, p, W * Cin), xpad_ref.dtype)
    xpad_ref[:, p:p + H, :] = x_ref[...]                     # already bf16
    y1 = bn_relu(conv_rows(xpad_ref[...], t1_ref, Cin))

    # ---- stage 2: intermediate stays in VMEM (bf16, vertical halo only) -----
    if p > 0:
        ypad_ref[:, :p, :] = jnp.zeros((N, p, W * Cout), ypad_ref.dtype)
        ypad_ref[:, p + H:, :] = jnp.zeros((N, p, W * Cout), ypad_ref.dtype)
    ypad_ref[:, p:p + H, :] = y1.reshape(N, H, W * Cout).astype(ypad_ref.dtype)
    y2 = bn_relu(conv_rows(ypad_ref[...], t2_ref, Cout))

    o_ref[...] = y2.astype(o_ref.dtype)                      # (N*H, W*Cout)


def unet_contract_double_forward(x_nchw, w1, b1, w2, b2, gamma, beta, padding,
                                 eps=1e-5):
    """Matches unet_contract_double.forward (module in default training mode)."""
    # Conv biases cancel exactly under training-mode BatchNorm (per-channel
    # mean subtraction removes any constant per-channel offset).
    del b1, b2

    N, Cin, H, W = x_nchw.shape
    KH, KW, _, Cout = w1.shape
    assert w2.shape == (KH, KW, Cout, Cout)
    assert 2 * padding == KH - 1 and 2 * padding == KW - 1, "same-padding only"

    # NCHW -> lane-dense NHWC row slabs (N, H, W*Cin), bf16 MXU operands.
    x_rows = jnp.transpose(x_nchw, (0, 2, 3, 1)).reshape(N, H, W * Cin)
    x_rows = x_rows.astype(jnp.bfloat16)

    # Width-padding folded in -> (KH, W*Ci, W*Cout), bf16 MXU operands.
    t1 = _make_row_toeplitz(w1, W, padding).astype(jnp.bfloat16)
    t2 = _make_row_toeplitz(w2, W, padding).astype(jnp.bfloat16)

    # One-hot matrices: lane (w*Cout + c) <-> channel c, for BN statistics
    # (kept f32 so the stat aggregation / broadcast matmuls are exact).
    lane_ch = jnp.tile(jnp.arange(Cout), W)                        # (W*Cout,)
    sum_mat = (lane_ch[:, None] == jnp.arange(Cout)[None, :]).astype(jnp.float32)
    bc_mat = sum_mat.T                                             # (Cout, W*Cout)

    # BN affine params stacked at channel width: row 0 = gamma, row 1 = beta.
    gb = jnp.stack([gamma.astype(jnp.float32), beta.astype(jnp.float32)], axis=0)

    kernel = functools.partial(
        _fused_kernel,
        N=N, H=H, W=W, Cin=Cin, Cout=Cout, KH=KH, p=padding, eps=eps)

    out = pl.pallas_call(
        kernel,
        out_shape=jax.ShapeDtypeStruct((N * H, W * Cout), jnp.float32),
        grid_spec=pltpu.PrefetchScalarGridSpec(
            num_scalar_prefetch=0,
            grid=(1,),
            in_specs=[
                pl.BlockSpec((N, H, W * Cin), lambda i: (0, 0, 0)),
                pl.BlockSpec((KH, W * Cin, W * Cout), lambda i: (0, 0, 0)),
                pl.BlockSpec((KH, W * Cout, W * Cout), lambda i: (0, 0, 0)),
                pl.BlockSpec((W * Cout, Cout), lambda i: (0, 0)),
                pl.BlockSpec((Cout, W * Cout), lambda i: (0, 0)),
                pl.BlockSpec((2, Cout), lambda i: (0, 0)),
            ],
            out_specs=pl.BlockSpec((N * H, W * Cout), lambda i: (0, 0)),
            scratch_shapes=[
                pltpu.VMEM((N, H + 2 * padding, W * Cin), jnp.bfloat16),
                pltpu.VMEM((N, H + 2 * padding, W * Cout), jnp.bfloat16),
            ],
        ),
        compiler_params=pltpu.CompilerParams(
            dimension_semantics=("arbitrary",)),
    )(x_rows, t1, t2, sum_mat, bc_mat, gb)

    # Lane-dense (N*H, W*Cout) -> NCHW.
    out = out.reshape(N, H, W, Cout)
    return jnp.transpose(out, (0, 3, 1, 2)).astype(x_nchw.dtype)


def _reference(x_nchw, w1, b1, w2, b2, gamma, beta, padding, eps=1e-5):
    """Pure-JAX f32 reference (lax conv, NCHW) — biases included on purpose."""
    def conv(x, w_hwio, b):
        w_oihw = jnp.transpose(w_hwio, (3, 2, 0, 1))
        y = jax.lax.conv_general_dilated(
            x, w_oihw, window_strides=(1, 1),
            padding=[(padding, padding), (padding, padding)],
            dimension_numbers=("NCHW", "OIHW", "NCHW"))
        return y + b.reshape(1, -1, 1, 1)

    def bn_relu(y):
        mean = jnp.mean(y, axis=(0, 2, 3), keepdims=True)
        var = jnp.mean((y - mean) ** 2, axis=(0, 2, 3), keepdims=True)
        yn = (y - mean) * jax.lax.rsqrt(var + eps)
        yn = yn * gamma.reshape(1, -1, 1, 1) + beta.reshape(1, -1, 1, 1)
        return jnp.maximum(yn, 0.0)

    y = bn_relu(conv(x_nchw, w1, b1))
    y = bn_relu(conv(y, w2, b2))
    return y


if __name__ == "__main__":
    N, Cin, Cout, H, W = 2, 4, 8, 16, 16
    KH = KW = 3
    padding = 1

    key = jax.random.PRNGKey(0)
    kx, k1, k2, k3, k4, k5, k6 = jax.random.split(key, 7)

    x = jax.random.normal(kx, (N, Cin, H, W), jnp.float32)
    w1 = 0.1 * jax.random.normal(k1, (KH, KW, Cin, Cout), jnp.float32)
    b1 = 0.1 * jax.random.normal(k2, (Cout,), jnp.float32)
    w2 = 0.1 * jax.random.normal(k3, (KH, KW, Cout, Cout), jnp.float32)
    b2 = 0.1 * jax.random.normal(k4, (Cout,), jnp.float32)
    gamma = 1.0 + 0.1 * jax.random.normal(k5, (Cout,), jnp.float32)
    beta = 0.1 * jax.random.normal(k6, (Cout,), jnp.float32)

    out = unet_contract_double_forward(x, w1, b1, w2, b2, gamma, beta, padding)
    out = jax.block_until_ready(out)

    ref = _reference(x, w1, b1, w2, b2, gamma, beta, padding)
    assert out.shape == (N, Cout, H, W)
    # bf16 MXU operands bound the per-element error to ~1e-2 on the
    # BN-normalized (unit-scale) activations; 3e-2 covers >10 sigma.
    assert jnp.allclose(out, ref, rtol=3e-2, atol=3e-2), "mismatch vs reference"

    print("KERNEL_OK")
</pallas_src>

<mosaic_0001>
module attributes {stable_mosaic.version = 11 : i64} {
  func.func @_fused_kernel(%arg0: i32, %arg1: memref<2x16x64xbf16, #tpu.memory_space<vmem>>, %arg2: memref<3x64x128xbf16, #tpu.memory_space<vmem>>, %arg3: memref<3x128x128xbf16, #tpu.memory_space<vmem>>, %arg4: memref<128x8xf32, #tpu.memory_space<vmem>>, %arg5: memref<8x128xf32, #tpu.memory_space<vmem>>, %arg6: memref<2x8xf32, #tpu.memory_space<vmem>>, %arg7: memref<32x128xf32, #tpu.memory_space<vmem>>, %arg8: memref<2x18x64xbf16, #tpu.memory_space<vmem>>, %arg9: memref<2x18x128xbf16, #tpu.memory_space<vmem>>) attributes {dimension_semantics = [#tpu.dimension_semantics<arbitrary>], iteration_bounds = array<i64: 1>, scalar_prefetch = 0 : i64, scratch_operands = 2 : i64, tpu.core_type = #tpu.core_type<tc>, window_params = [{pipeline_mode = #tpu.pipeline_mode<synchronous>, transform_indices = @transform_0, window_bounds = array<i64: 2, 16, 64>}, {pipeline_mode = #tpu.pipeline_mode<synchronous>, transform_indices = @transform_1, window_bounds = array<i64: 3, 64, 128>}, {pipeline_mode = #tpu.pipeline_mode<synchronous>, transform_indices = @transform_2, window_bounds = array<i64: 3, 128, 128>}, {pipeline_mode = #tpu.pipeline_mode<synchronous>, transform_indices = @transform_3, window_bounds = array<i64: 128, 8>}, {pipeline_mode = #tpu.pipeline_mode<synchronous>, transform_indices = @transform_4, window_bounds = array<i64: 8, 128>}, {pipeline_mode = #tpu.pipeline_mode<synchronous>, transform_indices = @transform_5, window_bounds = array<i64: 2, 8>}, {pipeline_mode = #tpu.pipeline_mode<synchronous>, transform_indices = @transform_6, window_bounds = array<i64: 32, 128>}]} {
    %cst = arith.constant 0.000000e+00 : bf16
    %0 = vector.broadcast %cst : bf16 to vector<2x1x64xbf16>
    %c0 = arith.constant 0 : index
    %c0_0 = arith.constant 0 : index
    %c0_1 = arith.constant 0 : index
    %1 = vector.load %arg8[%c0, %c0_0, %c0_1] : memref<2x18x64xbf16, #tpu.memory_space<vmem>>, vector<2x1x64xbf16>
    tpu.vector_store %arg8[%c0, %c0_0, %c0_1], %0 {strides = array<i32>} : memref<2x18x64xbf16, #tpu.memory_space<vmem>>, vector<2x1x64xbf16>,
    %cst_2 = arith.constant 0.000000e+00 : bf16
    %2 = vector.broadcast %cst_2 : bf16 to vector<2x1x64xbf16>
    %c0_3 = arith.constant 0 : index
    %c17 = arith.constant 17 : index
    %c0_4 = arith.constant 0 : index
    %3 = vector.load %arg8[%c0_3, %c17, %c0_4] : memref<2x18x64xbf16, #tpu.memory_space<vmem>>, vector<2x1x64xbf16>
    tpu.vector_store %arg8[%c0_3, %c17, %c0_4], %2 {strides = array<i32>} : memref<2x18x64xbf16, #tpu.memory_space<vmem>>, vector<2x1x64xbf16>,
    %c0_5 = arith.constant 0 : index
    %c0_6 = arith.constant 0 : index
    %c0_7 = arith.constant 0 : index
    %4 = vector.load %arg1[%c0_5, %c0_6, %c0_7] : memref<2x16x64xbf16, #tpu.memory_space<vmem>>, vector<2x16x64xbf16>
    %c0_8 = arith.constant 0 : index
    %c1 = arith.constant 1 : index
    %c0_9 = arith.constant 0 : index
    %5 = vector.load %arg8[%c0_8, %c1, %c0_9] : memref<2x18x64xbf16, #tpu.memory_space<vmem>>, vector<2x16x64xbf16>
    tpu.vector_store %arg8[%c0_8, %c1, %c0_9], %4 {strides = array<i32>} : memref<2x18x64xbf16, #tpu.memory_space<vmem>>, vector<2x16x64xbf16>,
    %c0_10 = arith.constant 0 : index
    %c0_11 = arith.constant 0 : index
    %c0_12 = arith.constant 0 : index
    %6 = vector.load %arg8[%c0_10, %c0_11, %c0_12] : memref<2x18x64xbf16, #tpu.memory_space<vmem>>, vector<2x18x64xbf16>
    %cst_13 = arith.constant 0.000000e+00 : f32
    %7 = vector.broadcast %cst_13 : f32 to vector<32x128xf32>
    %8 = vector.extract_strided_slice %6 {offsets = [0, 0, 0], sizes = [2, 16, 64], strides = [1, 1, 1]} : vector<2x18x64xbf16> to vector<2x16x64xbf16>
    %9 = vector.shape_cast %8 : vector<2x16x64xbf16> to vector<32x64xbf16>
    %c0_14 = arith.constant 0 : index
    %c0_15 = arith.constant 0 : index
    %c0_16 = arith.constant 0 : index
    %10 = vector.load %arg2[%c0_14, %c0_15, %c0_16] : memref<3x64x128xbf16, #tpu.memory_space<vmem>>, vector<1x64x128xbf16>
    %11 = vector.shape_cast %10 : vector<1x64x128xbf16> to vector<64x128xbf16>
    %cst_17 = arith.constant dense<0.000000e+00> : vector<32x128xf32>
    %12 = tpu.matmul %9, %11, %cst_17 {dimension_numbers = #tpu.dot_dimension_numbers<[1], [0], [0], [1], [0, 0, 1, 1], [], []>} : vector<32x64xbf16>, vector<64x128xbf16>, vector<32x128xf32> -> vector<32x128xf32>
    %13 = arith.addf %7, %12 : vector<32x128xf32>
    %14 = vector.extract_strided_slice %6 {offsets = [0, 1, 0], sizes = [2, 16, 64], strides = [1, 1, 1]} : vector<2x18x64xbf16> to vector<2x16x64xbf16>
    %15 = vector.shape_cast %14 : vector<2x16x64xbf16> to vector<32x64xbf16>
    %c1_18 = arith.constant 1 : index
    %c0_19 = arith.constant 0 : index
    %c0_20 = arith.constant 0 : index
    %16 = vector.load %arg2[%c1_18, %c0_19, %c0_20] : memref<3x64x128xbf16, #tpu.memory_space<vmem>>, vector<1x64x128xbf16>
    %17 = vector.shape_cast %16 : vector<1x64x128xbf16> to vector<64x128xbf16>
    %cst_21 = arith.constant dense<0.000000e+00> : vector<32x128xf32>
    %18 = tpu.matmul %15, %17, %cst_21 {dimension_numbers = #tpu.dot_dimension_numbers<[1], [0], [0], [1], [0, 0, 1, 1], [], []>} : vector<32x64xbf16>, vector<64x128xbf16>, vector<32x128xf32> -> vector<32x128xf32>
    %19 = arith.addf %13, %18 : vector<32x128xf32>
    %20 = vector.extract_strided_slice %6 {offsets = [0, 2, 0], sizes = [2, 16, 64], strides = [1, 1, 1]} : vector<2x18x64xbf16> to vector<2x16x64xbf16>
    %21 = vector.shape_cast %20 : vector<2x16x64xbf16> to vector<32x64xbf16>
    %c2 = arith.constant 2 : index
    %c0_22 = arith.constant 0 : index
    %c0_23 = arith.constant 0 : index
    %22 = vector.load %arg2[%c2, %c0_22, %c0_23] : memref<3x64x128xbf16, #tpu.memory_space<vmem>>, vector<1x64x128xbf16>
    %23 = vector.shape_cast %22 : vector<1x64x128xbf16> to vector<64x128xbf16>
    %cst_24 = arith.constant dense<0.000000e+00> : vector<32x128xf32>
    %24 = tpu.matmul %21, %23, %cst_24 {dimension_numbers = #tpu.dot_dimension_numbers<[1], [0], [0], [1], [0, 0, 1, 1], [], []>} : vector<32x64xbf16>, vector<64x128xbf16>, vector<32x128xf32> -> vector<32x128xf32>
    %25 = arith.addf %19, %24 : vector<32x128xf32>
    %cst_25 = arith.constant dense<0.000000e+00> : vector<128xf32>
    %26 = vector.multi_reduction <add>, %25, %cst_25 [0] : vector<32x128xf32> to vector<128xf32>
    %27 = vector.shape_cast %26 : vector<128xf32> to vector<1x128xf32>
    %28 = arith.mulf %25, %25 : vector<32x128xf32>
    %cst_26 = arith.constant dense<0.000000e+00> : vector<128xf32>
    %29 = vector.multi_reduction <add>, %28, %cst_26 [0] : vector<32x128xf32> to vector<128xf32>
    %30 = vector.shape_cast %29 : vector<128xf32> to vector<1x128xf32>
    %31 = tpu.concatenate %27, %30 in 0 : vector<1x128xf32>, vector<1x128xf32> -> vector<2x128xf32>
    %c0_27 = arith.constant 0 : index
    %c0_28 = arith.constant 0 : index
    %32 = vector.load %arg4[%c0_27, %c0_28] : memref<128x8xf32, #tpu.memory_space<vmem>>, vector<128x8xf32>
    %cst_29 = arith.constant dense<0.000000e+00> : vector<2x8xf32>
    %33 = tpu.matmul %31, %32, %cst_29 {dimension_numbers = #tpu.dot_dimension_numbers<[1], [0], [0], [1], [0, 0, 1, 1], [], []>} : vector<2x128xf32>, vector<128x8xf32>, vector<2x8xf32> -> vector<2x8xf32>
    %cst_30 = arith.constant 0.001953125 : f32
    %34 = vector.broadcast %cst_30 : f32 to vector<2x8xf32>
    %35 = arith.mulf %33, %34 : vector<2x8xf32>
    %36 = vector.extract_strided_slice %35 {offsets = [0, 0], sizes = [1, 8], strides = [1, 1]} : vector<2x8xf32> to vector<1x8xf32>
    %37 = vector.extract_strided_slice %35 {offsets = [1, 0], sizes = [1, 8], strides = [1, 1]} : vector<2x8xf32> to vector<1x8xf32>
    %38 = arith.mulf %36, %36 : vector<1x8xf32>
    %39 = arith.subf %37, %38 : vector<1x8xf32>
    %c0_31 = arith.constant 0 : index
    %c0_32 = arith.constant 0 : index
    %40 = vector.load %arg6[%c0_31, %c0_32] : memref<2x8xf32, #tpu.memory_space<vmem>>, vector<1x8xf32>
    %cst_33 = arith.constant 9.99999974E-6 : f32
    %41 = vector.broadcast %cst_33 : f32 to vector<1x8xf32>
    %42 = arith.addf %39, %41 : vector<1x8xf32>
    %43 = math.rsqrt %42 : vector<1x8xf32>
    %44 = arith.mulf %40, %43 : vector<1x8xf32>
    %c1_34 = arith.constant 1 : index
    %c0_35 = arith.constant 0 : index
    %45 = vector.load %arg6[%c1_34, %c0_35] : memref<2x8xf32, #tpu.memory_space<vmem>>, vector<1x8xf32>
    %46 = arith.mulf %36, %44 : vector<1x8xf32>
    %47 = arith.subf %45, %46 : vector<1x8xf32>
    %48 = tpu.concatenate %44, %47 in 0 : vector<1x8xf32>, vector<1x8xf32> -> vector<2x8xf32>
    %c0_36 = arith.constant 0 : index
    %c0_37 = arith.constant 0 : index
    %49 = vector.load %arg5[%c0_36, %c0_37] : memref<8x128xf32, #tpu.memory_space<vmem>>, vector<8x128xf32>
    %cst_38 = arith.constant dense<0.000000e+00> : vector<2x128xf32>
    %50 = tpu.matmul %48, %49, %cst_38 {dimension_numbers = #tpu.dot_dimension_numbers<[1], [0], [0], [1], [0, 0, 1, 1], [], []>} : vector<2x8xf32>, vector<8x128xf32>, vector<2x128xf32> -> vector<2x128xf32>
    %51 = vector.extract_strided_slice %50 {offsets = [0, 0], sizes = [1, 128], strides = [1, 1]} : vector<2x128xf32> to vector<1x128xf32>
    %52 = vector.broadcast %51 : vector<1x128xf32> to vector<32x128xf32>
    %53 = arith.mulf %25, %52 : vector<32x128xf32>
    %54 = vector.extract_strided_slice %50 {offsets = [1, 0], sizes = [1, 128], strides = [1, 1]} : vector<2x128xf32> to vector<1x128xf32>
    %55 = vector.broadcast %54 : vector<1x128xf32> to vector<32x128xf32>
    %56 = arith.addf %53, %55 : vector<32x128xf32>
    %cst_39 = arith.constant 0.000000e+00 : f32
    %57 = vector.broadcast %cst_39 : f32 to vector<32x128xf32>
    %58 = arith.maximumf %56, %57 : vector<32x128xf32>
    %cst_40 = arith.constant 0.000000e+00 : bf16
    %59 = vector.broadcast %cst_40 : bf16 to vector<2x1x128xbf16>
    %c0_41 = arith.constant 0 : index
    %c0_42 = arith.constant 0 : index
    %c0_43 = arith.constant 0 : index
    %60 = vector.load %arg9[%c0_41, %c0_42, %c0_43] : memref<2x18x128xbf16, #tpu.memory_space<vmem>>, vector<2x1x128xbf16>
    tpu.vector_store %arg9[%c0_41, %c0_42, %c0_43], %59 {strides = array<i32>} : memref<2x18x128xbf16, #tpu.memory_space<vmem>>, vector<2x1x128xbf16>,
    %cst_44 = arith.constant 0.000000e+00 : bf16
    %61 = vector.broadcast %cst_44 : bf16 to vector<2x1x128xbf16>
    %c0_45 = arith.constant 0 : index
    %c17_46 = arith.constant 17 : index
    %c0_47 = arith.constant 0 : index
    %62 = vector.load %arg9[%c0_45, %c17_46, %c0_47] : memref<2x18x128xbf16, #tpu.memory_space<vmem>>, vector<2x1x128xbf16>
    tpu.vector_store %arg9[%c0_45, %c17_46, %c0_47], %61 {strides = array<i32>} : memref<2x18x128xbf16, #tpu.memory_space<vmem>>, vector<2x1x128xbf16>,
    %63 = vector.shape_cast %58 : vector<32x128xf32> to vector<2x16x128xf32>
    %64 = arith.truncf %63 : vector<2x16x128xf32> to vector<2x16x128xbf16>
    %c0_48 = arith.constant 0 : index
    %c1_49 = arith.constant 1 : index
    %c0_50 = arith.constant 0 : index
    %65 = vector.load %arg9[%c0_48, %c1_49, %c0_50] : memref<2x18x128xbf16, #tpu.memory_space<vmem>>, vector<2x16x128xbf16>
    tpu.vector_store %arg9[%c0_48, %c1_49, %c0_50], %64 {strides = array<i32>} : memref<2x18x128xbf16, #tpu.memory_space<vmem>>, vector<2x16x128xbf16>,
    %c0_51 = arith.constant 0 : index
    %c0_52 = arith.constant 0 : index
    %c0_53 = arith.constant 0 : index
    %66 = vector.load %arg9[%c0_51, %c0_52, %c0_53] : memref<2x18x128xbf16, #tpu.memory_space<vmem>>, vector<2x18x128xbf16>
    %cst_54 = arith.constant 0.000000e+00 : f32
    %67 = vector.broadcast %cst_54 : f32 to vector<32x128xf32>
    %68 = vector.extract_strided_slice %66 {offsets = [0, 0, 0], sizes = [2, 16, 128], strides = [1, 1, 1]} : vector<2x18x128xbf16> to vector<2x16x128xbf16>
    %69 = vector.shape_cast %68 : vector<2x16x128xbf16> to vector<32x128xbf16>
    %c0_55 = arith.constant 0 : index
    %c0_56 = arith.constant 0 : index
    %c0_57 = arith.constant 0 : index
    %70 = vector.load %arg3[%c0_55, %c0_56, %c0_57] : memref<3x128x128xbf16, #tpu.memory_space<vmem>>, vector<1x128x128xbf16>
    %71 = vector.shape_cast %70 : vector<1x128x128xbf16> to vector<128x128xbf16>
    %cst_58 = arith.constant dense<0.000000e+00> : vector<32x128xf32>
    %72 = tpu.matmul %69, %71, %cst_58 {dimension_numbers = #tpu.dot_dimension_numbers<[1], [0], [0], [1], [0, 0, 1, 1], [], []>} : vector<32x128xbf16>, vector<128x128xbf16>, vector<32x128xf32> -> vector<32x128xf32>
    %73 = arith.addf %67, %72 : vector<32x128xf32>
    %74 = vector.extract_strided_slice %66 {offsets = [0, 1, 0], sizes = [2, 16, 128], strides = [1, 1, 1]} : vector<2x18x128xbf16> to vector<2x16x128xbf16>
    %75 = vector.shape_cast %74 : vector<2x16x128xbf16> to vector<32x128xbf16>
    %c1_59 = arith.constant 1 : index
    %c0_60 = arith.constant 0 : index
    %c0_61 = arith.constant 0 : index
    %76 = vector.load %arg3[%c1_59, %c0_60, %c0_61] : memref<3x128x128xbf16, #tpu.memory_space<vmem>>, vector<1x128x128xbf16>
    %77 = vector.shape_cast %76 : vector<1x128x128xbf16> to vector<128x128xbf16>
    %cst_62 = arith.constant dense<0.000000e+00> : vector<32x128xf32>
    %78 = tpu.matmul %75, %77, %cst_62 {dimension_numbers = #tpu.dot_dimension_numbers<[1], [0], [0], [1], [0, 0, 1, 1], [], []>} : vector<32x128xbf16>, vector<128x128xbf16>, vector<32x128xf32> -> vector<32x128xf32>
    %79 = arith.addf %73, %78 : vector<32x128xf32>
    %80 = vector.extract_strided_slice %66 {offsets = [0, 2, 0], sizes = [2, 16, 128], strides = [1, 1, 1]} : vector<2x18x128xbf16> to vector<2x16x128xbf16>
    %81 = vector.shape_cast %80 : vector<2x16x128xbf16> to vector<32x128xbf16>
    %c2_63 = arith.constant 2 : index
    %c0_64 = arith.constant 0 : index
    %c0_65 = arith.constant 0 : index
    %82 = vector.load %arg3[%c2_63, %c0_64, %c0_65] : memref<3x128x128xbf16, #tpu.memory_space<vmem>>, vector<1x128x128xbf16>
    %83 = vector.shape_cast %82 : vector<1x128x128xbf16> to vector<128x128xbf16>
    %cst_66 = arith.constant dense<0.000000e+00> : vector<32x128xf32>
    %84 = tpu.matmul %81, %83, %cst_66 {dimension_numbers = #tpu.dot_dimension_numbers<[1], [0], [0], [1], [0, 0, 1, 1], [], []>} : vector<32x128xbf16>, vector<128x128xbf16>, vector<32x128xf32> -> vector<32x128xf32>
    %85 = arith.addf %79, %84 : vector<32x128xf32>
    %cst_67 = arith.constant dense<0.000000e+00> : vector<128xf32>
    %86 = vector.multi_reduction <add>, %85, %cst_67 [0] : vector<32x128xf32> to vector<128xf32>
    %87 = vector.shape_cast %86 : vector<128xf32> to vector<1x128xf32>
    %88 = arith.mulf %85, %85 : vector<32x128xf32>
    %cst_68 = arith.constant dense<0.000000e+00> : vector<128xf32>
    %89 = vector.multi_reduction <add>, %88, %cst_68 [0] : vector<32x128xf32> to vector<128xf32>
    %90 = vector.shape_cast %89 : vector<128xf32> to vector<1x128xf32>
    %91 = tpu.concatenate %87, %90 in 0 : vector<1x128xf32>, vector<1x128xf32> -> vector<2x128xf32>
    %c0_69 = arith.constant 0 : index
    %c0_70 = arith.constant 0 : index
    %92 = vector.load %arg4[%c0_69, %c0_70] : memref<128x8xf32, #tpu.memory_space<vmem>>, vector<128x8xf32>
    %cst_71 = arith.constant dense<0.000000e+00> : vector<2x8xf32>
    %93 = tpu.matmul %91, %92, %cst_71 {dimension_numbers = #tpu.dot_dimension_numbers<[1], [0], [0], [1], [0, 0, 1, 1], [], []>} : vector<2x128xf32>, vector<128x8xf32>, vector<2x8xf32> -> vector<2x8xf32>
    %cst_72 = arith.constant 0.001953125 : f32
    %94 = vector.broadcast %cst_72 : f32 to vector<2x8xf32>
    %95 = arith.mulf %93, %94 : vector<2x8xf32>
    %96 = vector.extract_strided_slice %95 {offsets = [0, 0], sizes = [1, 8], strides = [1, 1]} : vector<2x8xf32> to vector<1x8xf32>
    %97 = vector.extract_strided_slice %95 {offsets = [1, 0], sizes = [1, 8], strides = [1, 1]} : vector<2x8xf32> to vector<1x8xf32>
    %98 = arith.mulf %96, %96 : vector<1x8xf32>
    %99 = arith.subf %97, %98 : vector<1x8xf32>
    %c0_73 = arith.constant 0 : index
    %c0_74 = arith.constant 0 : index
    %100 = vector.load %arg6[%c0_73, %c0_74] : memref<2x8xf32, #tpu.memory_space<vmem>>, vector<1x8xf32>
    %cst_75 = arith.constant 9.99999974E-6 : f32
    %101 = vector.broadcast %cst_75 : f32 to vector<1x8xf32>
    %102 = arith.addf %99, %101 : vector<1x8xf32>
    %103 = math.rsqrt %102 : vector<1x8xf32>
    %104 = arith.mulf %100, %103 : vector<1x8xf32>
    %c1_76 = arith.constant 1 : index
    %c0_77 = arith.constant 0 : index
    %105 = vector.load %arg6[%c1_76, %c0_77] : memref<2x8xf32, #tpu.memory_space<vmem>>, vector<1x8xf32>
    %106 = arith.mulf %96, %104 : vector<1x8xf32>
    %107 = arith.subf %105, %106 : vector<1x8xf32>
    %108 = tpu.concatenate %104, %107 in 0 : vector<1x8xf32>, vector<1x8xf32> -> vector<2x8xf32>
    %c0_78 = arith.constant 0 : index
    %c0_79 = arith.constant 0 : index
    %109 = vector.load %arg5[%c0_78, %c0_79] : memref<8x128xf32, #tpu.memory_space<vmem>>, vector<8x128xf32>
    %cst_80 = arith.constant dense<0.000000e+00> : vector<2x128xf32>
    %110 = tpu.matmul %108, %109, %cst_80 {dimension_numbers = #tpu.dot_dimension_numbers<[1], [0], [0], [1], [0, 0, 1, 1], [], []>} : vector<2x8xf32>, vector<8x128xf32>, vector<2x128xf32> -> vector<2x128xf32>
    %111 = vector.extract_strided_slice %110 {offsets = [0, 0], sizes = [1, 128], strides = [1, 1]} : vector<2x128xf32> to vector<1x128xf32>
    %112 = vector.broadcast %111 : vector<1x128xf32> to vector<32x128xf32>
    %113 = arith.mulf %85, %112 : vector<32x128xf32>
    %114 = vector.extract_strided_slice %110 {offsets = [1, 0], sizes = [1, 128], strides = [1, 1]} : vector<2x128xf32> to vector<1x128xf32>
    %115 = vector.broadcast %114 : vector<1x128xf32> to vector<32x128xf32>
    %116 = arith.addf %113, %115 : vector<32x128xf32>
    %cst_81 = arith.constant 0.000000e+00 : f32
    %117 = vector.broadcast %cst_81 : f32 to vector<32x128xf32>
    %118 = arith.maximumf %116, %117 : vector<32x128xf32>
    %c0_82 = arith.constant 0 : index
    %c0_83 = arith.constant 0 : index
    %119 = vector.load %arg7[%c0_82, %c0_83] : memref<32x128xf32, #tpu.memory_space<vmem>>, vector<32x128xf32>
    tpu.vector_store %arg7[%c0_82, %c0_83], %118 {strides = array<i32>} : memref<32x128xf32, #tpu.memory_space<vmem>>, vector<32x128xf32>,
    return
  }
  func.func @transform_0(%arg0: i32) -> (i32, i32, i32) {
    %c0_i32 = arith.constant 0 : i32
    %c0_i32_0 = arith.constant 0 : i32
    %c0_i32_1 = arith.constant 0 : i32
    %c0_i32_2 = arith.constant 0 : i32
    return %c0_i32, %c0_i32_0, %c0_i32_1 : i32, i32, i32
  }
  func.func @transform_1(%arg0: i32) -> (i32, i32, i32) {
    %c0_i32 = arith.constant 0 : i32
    %c0_i32_0 = arith.constant 0 : i32
    %c0_i32_1 = arith.constant 0 : i32
    %c0_i32_2 = arith.constant 0 : i32
    return %c0_i32, %c0_i32_0, %c0_i32_1 : i32, i32, i32
  }
  func.func @transform_2(%arg0: i32) -> (i32, i32, i32) {
    %c0_i32 = arith.constant 0 : i32
    %c0_i32_0 = arith.constant 0 : i32
    %c0_i32_1 = arith.constant 0 : i32
    %c0_i32_2 = arith.constant 0 : i32
    return %c0_i32, %c0_i32_0, %c0_i32_1 : i32, i32, i32
  }
  func.func @transform_3(%arg0: i32) -> (i32, i32) {
    %c0_i32 = arith.constant 0 : i32
    %c0_i32_0 = arith.constant 0 : i32
    %c0_i32_1 = arith.constant 0 : i32
    return %c0_i32, %c0_i32_0 : i32, i32
  }
  func.func @transform_4(%arg0: i32) -> (i32, i32) {
    %c0_i32 = arith.constant 0 : i32
    %c0_i32_0 = arith.constant 0 : i32
    %c0_i32_1 = arith.constant 0 : i32
    return %c0_i32, %c0_i32_0 : i32, i32
  }
  func.func @transform_5(%arg0: i32) -> (i32, i32) {
    %c0_i32 = arith.constant 0 : i32
    %c0_i32_0 = arith.constant 0 : i32
    %c0_i32_1 = arith.constant 0 : i32
    return %c0_i32, %c0_i32_0 : i32, i32
  }
  func.func @transform_6(%arg0: i32) -> (i32, i32) {
    %c0_i32 = arith.constant 0 : i32
    %c0_i32_0 = arith.constant 0 : i32
    %c0_i32_1 = arith.constant 0 : i32
    return %c0_i32, %c0_i32_0 : i32, i32
  }
}

</mosaic_0001>

<llo_original>
// kernel: tpu_custom_call.1
$region0: #{tpu_custom_call.1}
  #allocation0 [shape = 'u32[]', space=smem, size = 0x4, offset = 0x4, fixed_abs, tag = 'smem constant byte address 0x4 - core index']
  #allocation1 [shape = 'u32[144,128]{1,0:T(1,128)}', space=vmem, size = 0x12000, scoped, tag = 'internal scratch']
  #allocation2 [shape = 'bf16[2,18,64]{2,1,0:T(8,128)(2,1)}', space=vmem, size = 0x3000, scoped, tag = 'scratch operand']
  #allocation3 [shape = 'bf16[2,18,128]{2,1,0:T(8,128)(2,1)}', space=vmem, size = 0x3000, scoped, tag = 'scratch operand']
  %s0 = inlined_call_operand.vmem [shape: bf16[2,16,64], index: 0, kind: input, shape index: {}]
  %s1 = inlined_call_operand.vmem [shape: bf16[3,64,128], index: 1, kind: input, shape index: {}]
  %s2 = inlined_call_operand.hbm [shape: bf16[3,128,128], index: 2, kind: input, shape index: {}]
  %s3 = inlined_call_operand.vmem [shape: f32[128,8], index: 3, kind: input, shape index: {}]
  %s4 = inlined_call_operand.vmem [shape: f32[8,128], index: 4, kind: input, shape index: {}]
  %s5 = inlined_call_operand.vmem [shape: f32[2,8], index: 5, kind: input, shape index: {}]
  %s6 = inlined_call_operand.hbm [shape: f32[32,128], index: 6, kind: output, shape index: {}]
  %s7 = sld [smem:[#allocation0]]
  $region38: #{tpu_custom_call.1} parent=0
    _
  %s9 = ssub.s32 1, %s7
  %s10 = scalar_select 0, %s9, %s7
  $region1: #{tpu_custom_call.1} parent=0
    #allocation4 [shape = 'u8[98304]{0}', space=vmem, size = 0x18000, scoped, tag = 'input window, operand 2, single buffered']
    #allocation5 [shape = 's32[1]{0}', space=sflag, size = 0x4, scoped, tag = 'scoped memory for tpu_custom_call.1']
    #allocation6 [shape = 's32[1]{0}', space=sflag, size = 0x4, scoped, tag = 'scoped memory for tpu_custom_call.1']
    #allocation7 [shape = 'u8[16384]{0}', space=vmem, size = 0x4000, scoped, tag = 'output window, operand 0, single buffered']
    %11 = vsyncpa [#allocation5], 0
    %12 = vsyncpa [#allocation6], 0
    // Predicated region
    $region2: #{tpu_custom_call.1} parent=1 // pred_check
      _
    $region3: #{tpu_custom_call.1} parent=1 // pred_check_branch
      %14 = sbr.rel (0) target = $region5
    $region4: #{tpu_custom_call.1} parent=1 // pred_region
      _
    $region5: #{tpu_custom_call.1} parent=1 // pred_fallthru
      _
    // Predicated region
    $region6: #{tpu_custom_call.1} parent=1 // pred_check
      _
    $region7: #{tpu_custom_call.1} parent=1 // pred_check_branch
      %16 = sbr.rel (0) target = $region9
    $region8: #{tpu_custom_call.1} parent=1 // pred_region
      _
    $region9: #{tpu_custom_call.1} parent=1 // pred_fallthru
      _
    // Predicated region
    $region10: #{tpu_custom_call.1} parent=1 // pred_check
      _
    $region11: #{tpu_custom_call.1} parent=1 // pred_check_branch
      %18 = sbr.rel (0) target = $region13
    $region12: #{tpu_custom_call.1} parent=1 // pred_region
      %s20 = ssub.s32 3072, 3072
      %21 = vsyncadd [#allocation5], %s20
      %s22 = sshll.u32 [#allocation4], 4
      %s23 = int_to_ptr.vmem [resolvable:$true] %s22
      %28 = dma.hbm_to_vmem [thread:$0]  %s2, 3072, %s23, [#allocation5], 64, 64, 4
    $region13: #{tpu_custom_call.1} parent=1 // pred_fallthru
      _
    // Predicated region
    $region14: #{tpu_custom_call.1} parent=1 // pred_check
      _
    $region15: #{tpu_custom_call.1} parent=1 // pred_check_branch
      %30 = sbr.rel (0) target = $region17
    $region16: #{tpu_custom_call.1} parent=1 // pred_region
      _
    $region17: #{tpu_custom_call.1} parent=1 // pred_fallthru
      _
    // Predicated region
    $region18: #{tpu_custom_call.1} parent=1 // pred_check
      _
    $region19: #{tpu_custom_call.1} parent=1 // pred_check_branch
      %32 = sbr.rel (0) target = $region21
    $region20: #{tpu_custom_call.1} parent=1 // pred_region
      _
    $region21: #{tpu_custom_call.1} parent=1 // pred_fallthru
      _
    // Predicated region
    $region22: #{tpu_custom_call.1} parent=1 // pred_check
      _
    $region23: #{tpu_custom_call.1} parent=1 // pred_check_branch
      %34 = sbr.rel (0) target = $region25
    $region24: #{tpu_custom_call.1} parent=1 // pred_region
      _
    $region25: #{tpu_custom_call.1} parent=1 // pred_fallthru
      _
    // Predicated region
    $region26: #{tpu_custom_call.1} parent=1 // pred_check
      _
    $region27: #{tpu_custom_call.1} parent=1 // pred_check_branch
      %36 = sbr.rel (0) target = $region29
    $region28: #{tpu_custom_call.1} parent=1 // pred_region
      %37 = dma.done [#allocation5], 3072
    $region29: #{tpu_custom_call.1} parent=1 // pred_fallthru
      _
    %vm39 = vcmask 516096
    %vm40 = vsmask.f32 256
    %vm41 = vmand %vm39, %vm40
    %v42 = vld [vmem:[#allocation2] sm:$0x1]
    %v43 = vsel %vm41, 0, %v42
    %44 = vst [vmem:[#allocation2] sm:$0x1] %v43
    %v45 = vld [vmem:[#allocation2 + $0xc] sm:$0x1]
    %v46 = vsel %vm41, 0, %v45
    %47 = vst [vmem:[#allocation2 + $0xc] sm:$0x1] %v46
    %vm48 = vsmask.f32 7938
    %vm49 = vmand %vm39, %vm48
    %v50 = vld [vmem:[#allocation2 + $0x8] sm:$0x1]
    %v51 = vsel %vm49, 0, %v50
    %52 = vst [vmem:[#allocation2 + $0x8] sm:$0x1] %v51
    %v53 = vld [vmem:[#allocation2 + $0x14] sm:$0x1]
    %v54 = vsel %vm49, 0, %v53
    %55 = vst [vmem:[#allocation2 + $0x14] sm:$0x1] %v54
    %v56 = vld [vmem:[%s0] sm:$0xf]
    %v57 = vld [vmem:[%s0 + $0x4] sm:$0xf]
    %v58 = vld [vmem:[%s0 + $0x8] sm:$0xf]
    %v59 = vld [vmem:[%s0 + $0xc] sm:$0xf]
    %vm60 = vsmask.f32 4368
    %vm61 = vmor %vm40, %vm60
    %v63 = vshrl.u32 %v56, 16
    %v65 = vrot.slane %v63, 7
    %v66 = vshll.u32 %v56, 16
    %v68 = vor.u32 %v65, %v66
    %v69 = vrot.slane %v65, 4
    %v71 = vshrl.u32 %v57, 16
    %v73 = vrot.slane %v71, 7
    %v74 = vshll.u32 %v57, 16
    %v76 = vor.u32 %v73, %v74
    %v77 = vsel %vm61, %v69, %v76
    %v78 = vrot.slane %v73, 4
    %v80 = vshrl.u32 %v58, 16
    %v82 = vrot.slane %v80, 7
    %v83 = vshll.u32 %v58, 16
    %v85 = vor.u32 %v82, %v83
    %v86 = vrot.slane %v82, 4
    %v88 = vshrl.u32 %v59, 16
    %v90 = vrot.slane %v88, 7
    %v91 = vshll.u32 %v59, 16
    %v93 = vor.u32 %v90, %v91
    %v94 = vsel %vm61, %v86, %v93
    %v95 = vrot.slane %v90, 4
    %vm102 = vcmask 519168
    %vm103 = vmand %vm102, %vm48
    %v104 = vld [vmem:[#allocation2] sm:$0xf]
    %v105 = vsel %vm103, %v68, %v104
    %106 = vst [vmem:[#allocation2] sm:$0xf] %v105
    %vm107 = vcmask 519168
    %108 = vst.msk [vmem:[#allocation2 + $0x4] sm:$0xf] %vm107, %v77
    %v109 = vld [vmem:[#allocation2 + $0x8] sm:$0x1]
    %v110 = vsel %vm41, %v78, %v109
    %111 = vst [vmem:[#allocation2 + $0x8] sm:$0x1] %v110
    %v112 = vld [vmem:[#allocation2 + $0xc] sm:$0xf]
    %v113 = vsel %vm103, %v85, %v112
    %114 = vst [vmem:[#allocation2 + $0xc] sm:$0xf] %v113
    %115 = vst.msk [vmem:[#allocation2 + $0x10] sm:$0xf] %vm107, %v94
    %v116 = vld [vmem:[#allocation2 + $0x14] sm:$0x1]
    %v117 = vsel %vm41, %v95, %v116
    %118 = vst [vmem:[#allocation2 + $0x14] sm:$0x1] %v117
    %v119 = vld [vmem:[#allocation2] sm:$0xf]
    %v120 = vld [vmem:[#allocation2 + $0x4] sm:$0xf]
    %v121 = vld [vmem:[#allocation2 + $0x8] sm:$0x1]
    %v122 = vld [vmem:[#allocation2 + $0xc] sm:$0xf]
    %v123 = vld [vmem:[#allocation2 + $0x10] sm:$0xf]
    %v124 = vld [vmem:[#allocation2 + $0x14] sm:$0x1]
    %v125 = vld [vmem:[%s1] sm:$0xf]
    %v126 = vld [vmem:[%s1 + $0x4] sm:$0xf]
    %v127 = vld [vmem:[%s1 + $0x8] sm:$0xf]
    %v128 = vld [vmem:[%s1 + $0xc] sm:$0xf]
    %v129 = vld [vmem:[%s1 + $0x10] sm:$0xf]
    %v130 = vld [vmem:[%s1 + $0x14] sm:$0xf]
    %v131 = vld [vmem:[%s1 + $0x18] sm:$0xf]
    %v132 = vld [vmem:[%s1 + $0x1c] sm:$0xf]
    %vm133 = vsmask.f32 3328
    %vm134 = vsmask.f32 7440
    %vm135 = vmor %vm133, %vm134
    %v137 = vshrl.u32 %v119, 16
    %v139 = vrot.slane %v137, 4
    %v140 = vshll.u32 %v119, 16
    %v142 = vrot.slane %v140, 5
    %v143 = vor.u32 %v139, %v142
    %v144 = vrot.slane %v143, 4
    %v146 = vshll.u32 %v120, 16
    %v148 = vrot.slane %v146, 5
    %v149 = vsel %vm135, %v144, %v148
    %v150 = vshrl.u32 %v120, 16
    %v152 = vrot.slane %v150, 4
    %v153 = vor.u32 %v152, %v148
    %v154 = vrot.slane %v153, 4
    %v156 = vshll.u32 %v121, 16
    %v158 = vrot.slane %v156, 5
    %v159 = vsel %vm135, %v154, %v158
    %v161 = vshrl.u32 %v122, 16
    %v163 = vrot.slane %v161, 4
    %v164 = vshll.u32 %v122, 16
    %v166 = vrot.slane %v164, 5
    %v167 = vor.u32 %v163, %v166
    %v168 = vrot.slane %v167, 4
    %v170 = vshll.u32 %v123, 16
    %v172 = vrot.slane %v170, 5
    %v173 = vsel %vm135, %v168, %v172
    %v174 = vshrl.u32 %v123, 16
    %v176 = vrot.slane %v174, 4
    %v177 = vor.u32 %v176, %v172
    %v178 = vrot.slane %v177, 4
    %v180 = vshll.u32 %v124, 16
    %v182 = vrot.slane %v180, 5
    %v183 = vsel %vm135, %v178, %v182
    %s184 = scalar_lea.vmem %s1, 32
    %v185 = vld [vmem:[%s184] sm:$0xf]
    %v186 = vld [vmem:[%s184 + $0x4] sm:$0xf]
    %v187 = vld [vmem:[%s184 + $0x8] sm:$0xf]
    %v188 = vld [vmem:[%s184 + $0xc] sm:$0xf]
    %v189 = vld [vmem:[%s184 + $0x10] sm:$0xf]
    %v190 = vld [vmem:[%s184 + $0x14] sm:$0xf]
    %v191 = vld [vmem:[%s184 + $0x18] sm:$0xf]
    %v192 = vld [vmem:[%s184 + $0x1c] sm:$0xf]
    %v193 = vunpack.c.l.b16 %v149
    %v194 = vunpack.c.l.b16 %v159
    %v195 = vunpack.c.l.b16 %v173
    %v196 = vunpack.c.l.b16 %v183
    %v197 = vpack.c.b16 %v194, %v193
    %v198 = vpack.c.b16 %v196, %v195
    %v207 = vunpack.c.l.b16 %v185
    %v208 = vunpack.c.l.b16 %v186
    %v209 = vunpack.c.l.b16 %v187
    %v210 = vunpack.c.l.b16 %v188
    %v211 = vunpack.c.l.b16 %v189
    %v212 = vunpack.c.l.b16 %v190
    %v213 = vunpack.c.l.b16 %v191
    %v214 = vunpack.c.l.b16 %v192
    %v215 = vpack.c.b16 %v208, %v207
    %v216 = vpack.c.b16 %v210, %v209
    %v217 = vpack.c.b16 %v212, %v211
    %v218 = vpack.c.b16 %v214, %v213
    %vm223 = vcmask 523264
    %v225 = vsel %vm223, %v197, 0
    %v228 = vsel %vm223, %v198, 0
    %230 = vmatprep.subr.bf16.mxu0 0
    %231 = vmatpush1.bf16.msra.mxu0 0
    %232 = vmatprep.subr.bf16.mxu0 0
    %233 = vmatpush1.bf16.msra.mxu0 0
    %234 = vmatprep.subr.bf16.mxu0 0
    %235 = vmatpush1.bf16.msra.mxu0 0
    %236 = vmatprep.subr.bf16.mxu0 0
    %237 = vmatpush1.bf16.msra.mxu0 0
    %238 = vmatprep.subr.bf16.mxu0 0
    %239 = vmatpush1.bf16.msra.mxu0 %v218
    %240 = vmatprep.subr.bf16.mxu0 0
    %241 = vmatpush1.bf16.msra.mxu0 %v217
    %242 = vmatprep.subr.bf16.mxu0 0
    %243 = vmatpush1.bf16.msra.mxu0 %v216
    %244 = vmatprep.subr.bf16.mxu0 0
    %245 = vmatpush1.bf16.msra.mxu0 %v215
    %246 = vmatprep.subr.bf16.mxu0 0
    %247 = vmatpush2.bf16.msra.mxu0 0
    %248 = vmatprep.subr.bf16.mxu0 0
    %249 = vmatpush2.bf16.msra.mxu0 0
    %250 = vmatprep.subr.bf16.mxu0 0
    %251 = vmatpush2.bf16.msra.mxu0 0
    %252 = vmatprep.subr.bf16.mxu0 0
    %253 = vmatpush2.bf16.msra.mxu0 0
    %254 = vmatprep.subr.bf16.mxu0 0
    %255 = vmatpush2.bf16.msra.mxu0 0
    %256 = vmatprep.subr.bf16.mxu0 0
    %257 = vmatpush2.bf16.msra.mxu0 0
    %258 = vmatprep.subr.bf16.mxu0 0
    %259 = vmatpush2.bf16.msra.mxu0 0
    %260 = vmatprep.subr.bf16.mxu0 0
    %261 = vmatpush2.bf16.msra.mxu0 0
    %262 = vmatprep.mubr.bf16.mxu0 0
    %263 = vmatmul.mubr.bf16.gmra.mxu0 %v225
    %v264 = vpop.f32.mrf.mxu0
    %v265 = vadd.f32 0.0, %v264
    %v266 = vpop.f32.mrf.mxu0
    %v267 = vpop.f32.mrf.mxu0
    %v268 = vadd.f32 0.0, %v267
    %v269 = vpop.f32.mrf.mxu0
    %270 = vmatprep.mubr.bf16.mxu0 0
    %271 = vmatmul.mubr.bf16.gmra.mxu0 %v228
    %v272 = vpop.f32.mrf.mxu0
    %v273 = vadd.f32 0.0, %v272
    %v274 = vpop.f32.mrf.mxu0
    %v275 = vpop.f32.mrf.mxu0
    %v276 = vadd.f32 0.0, %v275
    %v277 = vpop.f32.mrf.mxu0
    %278 = vdwg.mxu0
    %v283 = vunpack.c.l.b16 %v119
    %v284 = vunpack.c.l.b16 %v120
    %v285 = vunpack.c.l.b16 %v122
    %v286 = vunpack.c.l.b16 %v123
    %v287 = vpack.c.b16 %v284, %v283
    %v288 = vpack.c.b16 %v286, %v285
    %v297 = vunpack.c.l.b16 %v125
    %v298 = vunpack.c.l.b16 %v126
    %v299 = vunpack.c.l.b16 %v127
    %v300 = vunpack.c.l.b16 %v128
    %v301 = vunpack.c.l.b16 %v129
    %v302 = vunpack.c.l.b16 %v130
    %v303 = vunpack.c.l.b16 %v131
    %v304 = vunpack.c.l.b16 %v132
    %v305 = vpack.c.b16 %v298, %v297
    %v306 = vpack.c.b16 %v300, %v299
    %v307 = vpack.c.b16 %v302, %v301
    %v308 = vpack.c.b16 %v304, %v303
    %v314 = vsel %vm223, %v287, 0
    %v317 = vsel %vm223, %v288, 0
    %319 = vmatprep.subr.bf16.mxu0 0
    %320 = vmatpush1.bf16.msra.mxu0 0
    %321 = vmatprep.subr.bf16.mxu0 0
    %322 = vmatpush1.bf16.msra.mxu0 0
    %323 = vmatprep.subr.bf16.mxu0 0
    %324 = vmatpush1.bf16.msra.mxu0 0
    %325 = vmatprep.subr.bf16.mxu0 0
    %326 = vmatpush1.bf16.msra.mxu0 0
    %327 = vmatprep.subr.bf16.mxu0 0
    %328 = vmatpush1.bf16.msra.mxu0 %v308
    %329 = vmatprep.subr.bf16.mxu0 0
    %330 = vmatpush1.bf16.msra.mxu0 %v307
    %331 = vmatprep.subr.bf16.mxu0 0
    %332 = vmatpush1.bf16.msra.mxu0 %v306
    %333 = vmatprep.subr.bf16.mxu0 0
    %334 = vmatpush1.bf16.msra.mxu0 %v305
    %335 = vmatprep.subr.bf16.mxu0 0
    %336 = vmatpush2.bf16.msra.mxu0 0
    %337 = vmatprep.subr.bf16.mxu0 0
    %338 = vmatpush2.bf16.msra.mxu0 0
    %339 = vmatprep.subr.bf16.mxu0 0
    %340 = vmatpush2.bf16.msra.mxu0 0
    %341 = vmatprep.subr.bf16.mxu0 0
    %342 = vmatpush2.bf16.msra.mxu0 0
    %343 = vmatprep.subr.bf16.mxu0 0
    %344 = vmatpush2.bf16.msra.mxu0 0
    %345 = vmatprep.subr.bf16.mxu0 0
    %346 = vmatpush2.bf16.msra.mxu0 0
    %347 = vmatprep.subr.bf16.mxu0 0
    %348 = vmatpush2.bf16.msra.mxu0 0
    %349 = vmatprep.subr.bf16.mxu0 0
    %350 = vmatpush2.bf16.msra.mxu0 0
    %351 = vmatprep.mubr.bf16.mxu0 0
    %352 = vmatmul.mubr.bf16.gmra.mxu0 %v314
    %v353 = vpop.f32.mrf.mxu0
    %v354 = vadd.f32 %v265, %v353
    %v355 = vpop.f32.mrf.mxu0
    %v356 = vpop.f32.mrf.mxu0
    %v357 = vadd.f32 %v268, %v356
    %v358 = vpop.f32.mrf.mxu0
    %359 = vmatprep.mubr.bf16.mxu0 0
    %360 = vmatmul.mubr.bf16.gmra.mxu0 %v317
    %v361 = vpop.f32.mrf.mxu0
    %v362 = vadd.f32 %v273, %v361
    %v363 = vpop.f32.mrf.mxu0
    %v364 = vpop.f32.mrf.mxu0
    %v365 = vadd.f32 %v276, %v364
    %v366 = vpop.f32.mrf.mxu0
    %367 = vdwg.mxu0
    %vm370 = vcmask 1042432
    %vm371 = vcmask 1046532
    %vm372 = vmor %vm370, %vm371
    %v373 = vrot.slane %v119, 5
    %v374 = vrot.slane %v373, 4
    %v375 = vrot.slane %v120, 5
    %v376 = vsel %vm372, %v374, %v375
    %v377 = vrot.slane %v375, 4
    %v378 = vrot.slane %v121, 5
    %v379 = vsel %vm372, %v377, %v378
    %v380 = vrot.slane %v122, 5
    %v381 = vrot.slane %v380, 4
    %v382 = vrot.slane %v123, 5
    %v383 = vsel %vm372, %v381, %v382
    %v384 = vrot.slane %v382, 4
    %v385 = vrot.slane %v124, 5
    %v386 = vsel %vm372, %v384, %v385
    %s387 = scalar_lea.vmem %s1, 64
    %v388 = vld [vmem:[%s387] sm:$0xf]
    %v389 = vld [vmem:[%s387 + $0x4] sm:$0xf]
    %v390 = vld [vmem:[%s387 + $0x8] sm:$0xf]
    %v391 = vld [vmem:[%s387 + $0xc] sm:$0xf]
    %v392 = vld [vmem:[%s387 + $0x10] sm:$0xf]
    %v393 = vld [vmem:[%s387 + $0x14] sm:$0xf]
    %v394 = vld [vmem:[%s387 + $0x18] sm:$0xf]
    %v395 = vld [vmem:[%s387 + $0x1c] sm:$0xf]
    %v396 = vunpack.c.l.b16 %v376
    %v397 = vunpack.c.l.b16 %v379
    %v398 = vunpack.c.l.b16 %v383
    %v399 = vunpack.c.l.b16 %v386
    %v400 = vpack.c.b16 %v397, %v396
    %v401 = vpack.c.b16 %v399, %v398
    %v410 = vunpack.c.l.b16 %v388
    %v411 = vunpack.c.l.b16 %v389
    %v412 = vunpack.c.l.b16 %v390
    %v413 = vunpack.c.l.b16 %v391
    %v414 = vunpack.c.l.b16 %v392
    %v415 = vunpack.c.l.b16 %v393
    %v416 = vunpack.c.l.b16 %v394
    %v417 = vunpack.c.l.b16 %v395
    %v418 = vpack.c.b16 %v411, %v410
    %v419 = vpack.c.b16 %v413, %v412
    %v420 = vpack.c.b16 %v415, %v414
    %v421 = vpack.c.b16 %v417, %v416
    %v427 = vsel %vm223, %v400, 0
    %v430 = vsel %vm223, %v401, 0
    %432 = vmatprep.subr.bf16.mxu0 0
    %433 = vmatpush1.bf16.msra.mxu0 0
    %434 = vmatprep.subr.bf16.mxu0 0
    %435 = vmatpush1.bf16.msra.mxu0 0
    %436 = vmatprep.subr.bf16.mxu0 0
    %437 = vmatpush1.bf16.msra.mxu0 0
    %438 = vmatprep.subr.bf16.mxu0 0
    %439 = vmatpush1.bf16.msra.mxu0 0
    %440 = vmatprep.subr.bf16.mxu0 0
    %441 = vmatpush1.bf16.msra.mxu0 %v421
    %442 = vmatprep.subr.bf16.mxu0 0
    %443 = vmatpush1.bf16.msra.mxu0 %v420
    %444 = vmatprep.subr.bf16.mxu0 0
    %445 = vmatpush1.bf16.msra.mxu0 %v419
    %446 = vmatprep.subr.bf16.mxu0 0
    %447 = vmatpush1.bf16.msra.mxu0 %v418
    %448 = vmatprep.subr.bf16.mxu0 0
    %449 = vmatpush2.bf16.msra.mxu0 0
    %450 = vmatprep.subr.bf16.mxu0 0
    %451 = vmatpush2.bf16.msra.mxu0 0
    %452 = vmatprep.subr.bf16.mxu0 0
    %453 = vmatpush2.bf16.msra.mxu0 0
    %454 = vmatprep.subr.bf16.mxu0 0
    %455 = vmatpush2.bf16.msra.mxu0 0
    %456 = vmatprep.subr.bf16.mxu0 0
    %457 = vmatpush2.bf16.msra.mxu0 0
    %458 = vmatprep.subr.bf16.mxu0 0
    %459 = vmatpush2.bf16.msra.mxu0 0
    %460 = vmatprep.subr.bf16.mxu0 0
    %461 = vmatpush2.bf16.msra.mxu0 0
    %462 = vmatprep.subr.bf16.mxu0 0
    %463 = vmatpush2.bf16.msra.mxu0 0
    %464 = vmatprep.mubr.bf16.mxu0 0
    %465 = vmatmul.mubr.bf16.gmra.mxu0 %v427
    %v466 = vpop.f32.mrf.mxu0
    %v467 = vadd.f32 0.0, %v466
    %v468 = vpop.f32.mrf.mxu0
    %v469 = vpop.f32.mrf.mxu0
    %v470 = vadd.f32 0.0, %v469
    %v471 = vpop.f32.mrf.mxu0
    %472 = vmatprep.mubr.bf16.mxu0 0
    %473 = vmatmul.mubr.bf16.gmra.mxu0 %v430
    %v474 = vpop.f32.mrf.mxu0
    %v475 = vadd.f32 0.0, %v474
    %v476 = vpop.f32.mrf.mxu0
    %v477 = vpop.f32.mrf.mxu0
    %v478 = vadd.f32 0.0, %v477
    %v479 = vpop.f32.mrf.mxu0
    %480 = vdwg.mxu0
    %v481 = vadd.f32 %v354, %v467
    %v482 = vadd.f32 %v357, %v470
    %v483 = vadd.f32 %v362, %v475
    %v484 = vadd.f32 %v365, %v478
    %v485 = vadd.f32 %v481, %v482
    %v486 = vadd.f32 %v485, %v483
    %v487 = vadd.f32 %v486, %v484
    %v488 = vrot.slane %v487, 4
    %v489 = vadd.f32 %v487, %v488
    %v490 = vrot.slane %v489, 2
    %v491 = vadd.f32 %v489, %v490
    %v492 = vrot.slane %v491, 1
    %v493 = vadd.f32 %v491, %v492
    %v494 = vmul.f32 %v481, %v481
    %v495 = vmul.f32 %v482, %v482
    %v496 = vmul.f32 %v483, %v483
    %v497 = vmul.f32 %v484, %v484
    %v498 = vadd.f32 %v494, %v495
    %v499 = vadd.f32 %v498, %v496
    %v500 = vadd.f32 %v499, %v497
    %v501 = vrot.slane %v500, 4
    %v502 = vadd.f32 %v500, %v501
    %v503 = vrot.slane %v502, 2
    %v504 = vadd.f32 %v502, %v503
    %v505 = vrot.slane %v504, 1
    %v506 = vadd.f32 %v504, %v505
    %vm507 = vcmask 1040384
    %v508 = vsel %vm507, %v493, %v506
    %v509 = vld [vmem:[%s3] sm:$0xff]
    %v510 = vld [vmem:[%s3 + $0x8] sm:$0xff]
    %v511 = vld [vmem:[%s3 + $0x10] sm:$0xff]
    %v512 = vld [vmem:[%s3 + $0x18] sm:$0xff]
    %v513 = vld [vmem:[%s3 + $0x20] sm:$0xff]
    %v514 = vld [vmem:[%s3 + $0x28] sm:$0xff]
    %v515 = vld [vmem:[%s3 + $0x30] sm:$0xff]
    %v516 = vld [vmem:[%s3 + $0x38] sm:$0xff]
    %v517 = vld [vmem:[%s3 + $0x40] sm:$0xff]
    %v518 = vld [vmem:[%s3 + $0x48] sm:$0xff]
    %v519 = vld [vmem:[%s3 + $0x50] sm:$0xff]
    %v520 = vld [vmem:[%s3 + $0x58] sm:$0xff]
    %v521 = vld [vmem:[%s3 + $0x60] sm:$0xff]
    %v522 = vld [vmem:[%s3 + $0x68] sm:$0xff]
    %v523 = vld [vmem:[%s3 + $0x70] sm:$0xff]
    %v524 = vld [vmem:[%s3 + $0x78] sm:$0xff]
    %525 = vmatprep.subr.mxu0 0.0
    %526 = vmatpush1.msra.mxu0 %v524
    %527 = vmatprep.subr.mxu0 0.0
    %528 = vmatpush1.msra.mxu0 %v523
    %529 = vmatprep.subr.mxu0 0.0
    %530 = vmatpush1.msra.mxu0 %v522
    %531 = vmatprep.subr.mxu0 0.0
    %532 = vmatpush1.msra.mxu0 %v521
    %533 = vmatprep.subr.mxu0 0.0
    %534 = vmatpush1.msra.mxu0 %v520
    %535 = vmatprep.subr.mxu0 0.0
    %536 = vmatpush1.msra.mxu0 %v519
    %537 = vmatprep.subr.mxu0 0.0
    %538 = vmatpush1.msra.mxu0 %v518
    %539 = vmatprep.subr.mxu0 0.0
    %540 = vmatpush1.msra.mxu0 %v517
    %541 = vmatprep.subr.mxu0 0.0
    %542 = vmatpush1.msra.mxu0 %v516
    %543 = vmatprep.subr.mxu0 0.0
    %544 = vmatpush1.msra.mxu0 %v515
    %545 = vmatprep.subr.mxu0 0.0
    %546 = vmatpush1.msra.mxu0 %v514
    %547 = vmatprep.subr.mxu0 0.0
    %548 = vmatpush1.msra.mxu0 %v513
    %549 = vmatprep.subr.mxu0 0.0
    %550 = vmatpush1.msra.mxu0 %v512
    %551 = vmatprep.subr.mxu0 0.0
    %552 = vmatpush1.msra.mxu0 %v511
    %553 = vmatprep.subr.mxu0 0.0
    %554 = vmatpush1.msra.mxu0 %v510
    %555 = vmatprep.subr.mxu0 0.0
    %556 = vmatpush1.msra.mxu0 %v509
    %557 = vmatprep.subr.mxu0 0.0
    %558 = vmatpush2.msra.mxu0 0.0
    %559 = vmatprep.subr.mxu0 0.0
    %560 = vmatpush2.msra.mxu0 0.0
    %561 = vmatprep.subr.mxu0 0.0
    %562 = vmatpush2.msra.mxu0 0.0
    %563 = vmatprep.subr.mxu0 0.0
    %564 = vmatpush2.msra.mxu0 0.0
    %565 = vmatprep.subr.mxu0 0.0
    %566 = vmatpush2.msra.mxu0 0.0
    %567 = vmatprep.subr.mxu0 0.0
    %568 = vmatpush2.msra.mxu0 0.0
    %569 = vmatprep.subr.mxu0 0.0
    %570 = vmatpush2.msra.mxu0 0.0
    %571 = vmatprep.subr.mxu0 0.0
    %572 = vmatpush2.msra.mxu0 0.0
    %573 = vmatprep.subr.mxu0 0.0
    %574 = vmatpush2.msra.mxu0 0.0
    %575 = vmatprep.subr.mxu0 0.0
    %576 = vmatpush2.msra.mxu0 0.0
    %577 = vmatprep.subr.mxu0 0.0
    %578 = vmatpush2.msra.mxu0 0.0
    %579 = vmatprep.subr.mxu0 0.0
    %580 = vmatpush2.msra.mxu0 0.0
    %581 = vmatprep.subr.mxu0 0.0
    %582 = vmatpush2.msra.mxu0 0.0
    %583 = vmatprep.subr.mxu0 0.0
    %584 = vmatpush2.msra.mxu0 0.0
    %585 = vmatprep.subr.mxu0 0.0
    %586 = vmatpush2.msra.mxu0 0.0
    %587 = vmatprep.subr.mxu0 0.0
    %588 = vmatpush2.msra.mxu0 0.0
    %589 = vmatprep.mubr.f32.mxu0 0.0
    %590 = vmatmul.mubr.f32.gmra.mxu0 %v508
    %v591 = vpop.f32.mrf.mxu0
    %v592 = vadd.f32 0.0, %v591
    %v593 = vpop.f32.mrf.mxu0
    %594 = vdwg.mxu0
    %v595 = vmul.f32 %v592, 0.001953125
    %v596 = vmul.f32 %v595, %v595
    %v598 = vrot.slane %v596, 7
    %v600 = vsub.f32 %v595, %v598
    %v601 = vld [vmem:[%s5] sm:$0x1]
    %v602 = vadd.f32 %v600, 1e-05
    %v603 = vrsqrt.pop %v602
    %v605 = vrot.slane %v603, 1
    %v607 = vmul.f32 %v601, %v605
    %v608 = vld [vmem:[%s5 + $0x1] sm:$0x1]
    %v609 = vmul.f32 %v595, %v607
    %v610 = vsub.f32 %v608, %v609
    %v612 = vrot.slane %v610, 7
    %v614 = vsel %vm507, %v607, %v612
    %v615 = vld [vmem:[%s4] sm:$0xff]
    %vm616 = vcmask 64512
    %v618 = vsel %vm616, %v614, 0
    %620 = vmatprep.subr.mxu0 0.0
    %621 = vmatpush1.msra.mxu0 0.0
    %622 = vmatprep.subr.mxu0 0.0
    %623 = vmatpush1.msra.mxu0 0.0
    %624 = vmatprep.subr.mxu0 0.0
    %625 = vmatpush1.msra.mxu0 0.0
    %626 = vmatprep.subr.mxu0 0.0
    %627 = vmatpush1.msra.mxu0 0.0
    %628 = vmatprep.subr.mxu0 0.0
    %629 = vmatpush1.msra.mxu0 0.0
    %630 = vmatprep.subr.mxu0 0.0
    %631 = vmatpush1.msra.mxu0 0.0
    %632 = vmatprep.subr.mxu0 0.0
    %633 = vmatpush1.msra.mxu0 0.0
    %634 = vmatprep.subr.mxu0 0.0
    %635 = vmatpush1.msra.mxu0 0.0
    %636 = vmatprep.subr.mxu0 0.0
    %637 = vmatpush1.msra.mxu0 0.0
    %638 = vmatprep.subr.mxu0 0.0
    %639 = vmatpush1.msra.mxu0 0.0
    %640 = vmatprep.subr.mxu0 0.0
    %641 = vmatpush1.msra.mxu0 0.0
    %642 = vmatprep.subr.mxu0 0.0
    %643 = vmatpush1.msra.mxu0 0.0
    %644 = vmatprep.subr.mxu0 0.0
    %645 = vmatpush1.msra.mxu0 0.0
    %646 = vmatprep.subr.mxu0 0.0
    %647 = vmatpush1.msra.mxu0 0.0
    %648 = vmatprep.subr.mxu0 0.0
    %649 = vmatpush1.msra.mxu0 0.0
    %650 = vmatprep.subr.mxu0 0.0
    %651 = vmatpush1.msra.mxu0 %v615
    %652 = vmatprep.subr.mxu0 0.0
    %653 = vmatpush2.msra.mxu0 0.0
    %654 = vmatprep.subr.mxu0 0.0
    %655 = vmatpush2.msra.mxu0 0.0
    %656 = vmatprep.subr.mxu0 0.0
    %657 = vmatpush2.msra.mxu0 0.0
    %658 = vmatprep.subr.mxu0 0.0
    %659 = vmatpush2.msra.mxu0 0.0
    %660 = vmatprep.subr.mxu0 0.0
    %661 = vmatpush2.msra.mxu0 0.0
    %662 = vmatprep.subr.mxu0 0.0
    %663 = vmatpush2.msra.mxu0 0.0
    %664 = vmatprep.subr.mxu0 0.0
    %665 = vmatpush2.msra.mxu0 0.0
    %666 = vmatprep.subr.mxu0 0.0
    %667 = vmatpush2.msra.mxu0 0.0
    %668 = vmatprep.subr.mxu0 0.0
    %669 = vmatpush2.msra.mxu0 0.0
    %670 = vmatprep.subr.mxu0 0.0
    %671 = vmatpush2.msra.mxu0 0.0
    %672 = vmatprep.subr.mxu0 0.0
    %673 = vmatpush2.msra.mxu0 0.0
    %674 = vmatprep.subr.mxu0 0.0
    %675 = vmatpush2.msra.mxu0 0.0
    %676 = vmatprep.subr.mxu0 0.0
    %677 = vmatpush2.msra.mxu0 0.0
    %678 = vmatprep.subr.mxu0 0.0
    %679 = vmatpush2.msra.mxu0 0.0
    %680 = vmatprep.subr.mxu0 0.0
    %681 = vmatpush2.msra.mxu0 0.0
    %682 = vmatprep.subr.mxu0 0.0
    %683 = vmatpush2.msra.mxu0 0.0
    %684 = vmatprep.mubr.f32.mxu0 0.0
    %685 = vmatmul.mubr.f32.gmra.mxu0 %v618
    %v686 = vpop.f32.mrf.mxu0
    %v687 = vadd.f32 0.0, %v686
    %v688 = vpop.f32.mrf.mxu0
    %689 = vdwg.mxu0
    %v690 = vlaneseq
    %v691 = vshrl.u32 %v690, 7
    %v692 = vsub.s32 0, %v691
    %v693 = vrot.slane %v687, %v692
    %v694 = vmul.f32 %v481, %v693
    %v695 = vmul.f32 %v482, %v693
    %v696 = vmul.f32 %v483, %v693
    %v697 = vmul.f32 %v484, %v693
    %v698 = vlaneseq
    %v699 = vshrl.u32 %v698, 7
    %v700 = vsub.s32 1, %v699
    %v701 = vrot.slane %v687, %v700
    %v702 = vadd.f32 %v694, %v701
    %v703 = vadd.f32 %v695, %v701
    %v704 = vadd.f32 %v696, %v701
    %v705 = vadd.f32 %v697, %v701
    %v706 = vmax.f32 %v702, 0.0
    %v707 = vmax.f32 %v703, 0.0
    %v708 = vmax.f32 %v704, 0.0
    %v709 = vmax.f32 %v705, 0.0
    %vm710 = vcmask 1040384
    %vm711 = vmand %vm710, %vm40
    %v712 = vld [vmem:[#allocation3] sm:$0x1]
    %v713 = vsel %vm711, 0, %v712
    %714 = vst [vmem:[#allocation3] sm:$0x1] %v713
    %v715 = vld [vmem:[#allocation3 + $0xc] sm:$0x1]
    %v716 = vsel %vm711, 0, %v715
    %717 = vst [vmem:[#allocation3 + $0xc] sm:$0x1] %v716
    %vm718 = vmand %vm710, %vm48
    %v719 = vld [vmem:[#allocation3 + $0x8] sm:$0x1]
    %v720 = vsel %vm718, 0, %v719
    %721 = vst [vmem:[#allocation3 + $0x8] sm:$0x1] %v720
    %v722 = vld [vmem:[#allocation3 + $0x14] sm:$0x1]
    %v723 = vsel %vm718, 0, %v722
    %724 = vst [vmem:[#allocation3 + $0x14] sm:$0x1] %v723
    %v725 = vpack.c.bf16 %v707, %v706
    %v726 = vpack.c.bf16 %v709, %v708
    %v729 = vunpack.c.l.b16 %v725
    %v730 = vunpack.c.h.b16 %v725
    %v731 = vunpack.c.l.b16 %v726
    %v732 = vunpack.c.h.b16 %v726
    %v733 = vpack.c.b16 %v729, %v729
    %v734 = vpack.c.b16 %v730, %v730
    %v735 = vpack.c.b16 %v731, %v731
    %v736 = vpack.c.b16 %v732, %v732
    %v738 = vshrl.u32 %v733, 16
    %v740 = vrot.slane %v738, 7
    %v741 = vshll.u32 %v733, 16
    %v743 = vor.u32 %v740, %v741
    %v744 = vrot.slane %v740, 4
    %v746 = vshrl.u32 %v734, 16
    %v748 = vrot.slane %v746, 7
    %v749 = vshll.u32 %v734, 16
    %v751 = vor.u32 %v748, %v749
    %v752 = vsel %vm61, %v744, %v751
    %v753 = vrot.slane %v748, 4
    %v755 = vshrl.u32 %v735, 16
    %v757 = vrot.slane %v755, 7
    %v758 = vshll.u32 %v735, 16
    %v760 = vor.u32 %v757, %v758
    %v761 = vrot.slane %v757, 4
    %v763 = vshrl.u32 %v736, 16
    %v765 = vrot.slane %v763, 7
    %v766 = vshll.u32 %v736, 16
    %v768 = vor.u32 %v765, %v766
    %v769 = vsel %vm61, %v761, %v768
    %v770 = vrot.slane %v765, 4
    %vm777 = vcmask 1043456
    %vm778 = vmand %vm777, %vm48
    %v779 = vld [vmem:[#allocation3] sm:$0xf]
    %v780 = vsel %vm778, %v743, %v779
    %781 = vst [vmem:[#allocation3] sm:$0xf] %v780
    %782 = vst [vmem:[#allocation3 + $0x4] sm:$0xf] %v752
    %v783 = vld [vmem:[#allocation3 + $0x8] sm:$0x1]
    %v784 = vsel %vm711, %v753, %v783
    %785 = vst [vmem:[#allocation3 + $0x8] sm:$0x1] %v784
    %v786 = vld [vmem:[#allocation3 + $0xc] sm:$0xf]
    %v787 = vsel %vm778, %v760, %v786
    %788 = vst [vmem:[#allocation3 + $0xc] sm:$0xf] %v787
    %789 = vst [vmem:[#allocation3 + $0x10] sm:$0xf] %v769
    %v790 = vld [vmem:[#allocation3 + $0x14] sm:$0x1]
    %v791 = vsel %vm711, %v770, %v790
    %792 = vst [vmem:[#allocation3 + $0x14] sm:$0x1] %v791
    %v793 = vld [vmem:[#allocation3] sm:$0xf]
    %v794 = vld [vmem:[#allocation3 + $0x4] sm:$0xf]
    %v795 = vld [vmem:[#allocation3 + $0x8] sm:$0x1]
    %v796 = vld [vmem:[#allocation3 + $0xc] sm:$0xf]
    %v797 = vld [vmem:[#allocation3 + $0x10] sm:$0xf]
    %v798 = vld [vmem:[#allocation3 + $0x14] sm:$0x1]
    %v799 = vld [vmem:[#allocation4] sm:$0xf]
    %v800 = vld [vmem:[#allocation4 + $0x4] sm:$0xf]
    %v801 = vld [vmem:[#allocation4 + $0x8] sm:$0xf]
    %v802 = vld [vmem:[#allocation4 + $0xc] sm:$0xf]
    %v803 = vld [vmem:[#allocation4 + $0x10] sm:$0xf]
    %v804 = vld [vmem:[#allocation4 + $0x14] sm:$0xf]
    %v805 = vld [vmem:[#allocation4 + $0x18] sm:$0xf]
    %v806 = vld [vmem:[#allocation4 + $0x1c] sm:$0xf]
    %v807 = vld [vmem:[#allocation4 + $0x20] sm:$0xf]
    %v808 = vld [vmem:[#allocation4 + $0x24] sm:$0xf]
    %v809 = vld [vmem:[#allocation4 + $0x28] sm:$0xf]
    %v810 = vld [vmem:[#allocation4 + $0x2c] sm:$0xf]
    %v811 = vld [vmem:[#allocation4 + $0x30] sm:$0xf]
    %v812 = vld [vmem:[#allocation4 + $0x34] sm:$0xf]
    %v813 = vld [vmem:[#allocation4 + $0x38] sm:$0xf]
    %v814 = vld [vmem:[#allocation4 + $0x3c] sm:$0xf]
    %v816 = vshrl.u32 %v793, 16
    %v818 = vrot.slane %v816, 4
    %v819 = vshll.u32 %v793, 16
    %v821 = vrot.slane %v819, 5
    %v822 = vor.u32 %v818, %v821
    %v823 = vrot.slane %v822, 4
    %v825 = vshll.u32 %v794, 16
    %v827 = vrot.slane %v825, 5
    %v828 = vsel %vm135, %v823, %v827
    %v829 = vshrl.u32 %v794, 16
    %v831 = vrot.slane %v829, 4
    %v832 = vor.u32 %v831, %v827
    %v833 = vrot.slane %v832, 4
    %v835 = vshll.u32 %v795, 16
    %v837 = vrot.slane %v835, 5
    %v838 = vsel %vm135, %v833, %v837
    %v840 = vshrl.u32 %v796, 16
    %v842 = vrot.slane %v840, 4
    %v843 = vshll.u32 %v796, 16
    %v845 = vrot.slane %v843, 5
    %v846 = vor.u32 %v842, %v845
    %v847 = vrot.slane %v846, 4
    %v849 = vshll.u32 %v797, 16
    %v851 = vrot.slane %v849, 5
    %v852 = vsel %vm135, %v847, %v851
    %v853 = vshrl.u32 %v797, 16
    %v855 = vrot.slane %v853, 4
    %v856 = vor.u32 %v855, %v851
    %v857 = vrot.slane %v856, 4
    %v859 = vshll.u32 %v798, 16
    %v861 = vrot.slane %v859, 5
    %v862 = vsel %vm135, %v857, %v861
    %s863 = scalar_lea.vmem [#allocation4], 64
    %v864 = vld [vmem:[%s863] sm:$0xf]
    %v865 = vld [vmem:[%s863 + $0x4] sm:$0xf]
    %v866 = vld [vmem:[%s863 + $0x8] sm:$0xf]
    %v867 = vld [vmem:[%s863 + $0xc] sm:$0xf]
    %v868 = vld [vmem:[%s863 + $0x10] sm:$0xf]
    %v869 = vld [vmem:[%s863 + $0x14] sm:$0xf]
    %v870 = vld [vmem:[%s863 + $0x18] sm:$0xf]
    %v871 = vld [vmem:[%s863 + $0x1c] sm:$0xf]
    %v872 = vld [vmem:[%s863 + $0x20] sm:$0xf]
    %v873 = vld [vmem:[%s863 + $0x24] sm:$0xf]
    %v874 = vld [vmem:[%s863 + $0x28] sm:$0xf]
    %v875 = vld [vmem:[%s863 + $0x2c] sm:$0xf]
    %v876 = vld [vmem:[%s863 + $0x30] sm:$0xf]
    %v877 = vld [vmem:[%s863 + $0x34] sm:$0xf]
    %v878 = vld [vmem:[%s863 + $0x38] sm:$0xf]
    %v879 = vld [vmem:[%s863 + $0x3c] sm:$0xf]
    %v880 = vunpack.c.l.b16 %v828
    %v881 = vunpack.c.l.b16 %v838
    %v882 = vunpack.c.l.b16 %v852
    %v883 = vunpack.c.l.b16 %v862
    %v884 = vpack.c.b16 %v881, %v880
    %v885 = vpack.c.b16 %v883, %v882
    %v904 = vunpack.c.l.b16 %v864
    %v905 = vunpack.c.l.b16 %v865
    %v906 = vunpack.c.l.b16 %v866
    %v907 = vunpack.c.l.b16 %v867
    %v908 = vunpack.c.l.b16 %v868
    %v909 = vunpack.c.l.b16 %v869
    %v910 = vunpack.c.l.b16 %v870
    %v911 = vunpack.c.l.b16 %v871
    %v912 = vunpack.c.l.b16 %v872
    %v913 = vunpack.c.l.b16 %v873
    %v914 = vunpack.c.l.b16 %v874
    %v915 = vunpack.c.l.b16 %v875
    %v916 = vunpack.c.l.b16 %v876
    %v917 = vunpack.c.l.b16 %v877
    %v918 = vunpack.c.l.b16 %v878
    %v919 = vunpack.c.l.b16 %v879
    %v920 = vpack.c.b16 %v905, %v904
    %v921 = vpack.c.b16 %v907, %v906
    %v922 = vpack.c.b16 %v909, %v908
    %v923 = vpack.c.b16 %v911, %v910
    %v924 = vpack.c.b16 %v913, %v912
    %v925 = vpack.c.b16 %v915, %v914
    %v926 = vpack.c.b16 %v917, %v916
    %v927 = vpack.c.b16 %v919, %v918
    %936 = vmatprep.subr.bf16.mxu0 0
    %937 = vmatpush1.bf16.msra.mxu0 %v927
    %938 = vmatprep.subr.bf16.mxu0 0
    %939 = vmatpush1.bf16.msra.mxu0 %v926
    %940 = vmatprep.subr.bf16.mxu0 0
    %941 = vmatpush1.bf16.msra.mxu0 %v925
    %942 = vmatprep.subr.bf16.mxu0 0
    %943 = vmatpush1.bf16.msra.mxu0 %v924
    %944 = vmatprep.subr.bf16.mxu0 0
    %945 = vmatpush1.bf16.msra.mxu0 %v923
    %946 = vmatprep.subr.bf16.mxu0 0
    %947 = vmatpush1.bf16.msra.mxu0 %v922
    %948 = vmatprep.subr.bf16.mxu0 0
    %949 = vmatpush1.bf16.msra.mxu0 %v921
    %950 = vmatprep.subr.bf16.mxu0 0
    %951 = vmatpush1.bf16.msra.mxu0 %v920
    %952 = vmatprep.subr.bf16.mxu0 0
    %953 = vmatpush2.bf16.msra.mxu0 0
    %954 = vmatprep.subr.bf16.mxu0 0
    %955 = vmatpush2.bf16.msra.mxu0 0
    %956 = vmatprep.subr.bf16.mxu0 0
    %957 = vmatpush2.bf16.msra.mxu0 0
    %958 = vmatprep.subr.bf16.mxu0 0
    %959 = vmatpush2.bf16.msra.mxu0 0
    %960 = vmatprep.subr.bf16.mxu0 0
    %961 = vmatpush2.bf16.msra.mxu0 0
    %962 = vmatprep.subr.bf16.mxu0 0
    %963 = vmatpush2.bf16.msra.mxu0 0
    %964 = vmatprep.subr.bf16.mxu0 0
    %965 = vmatpush2.bf16.msra.mxu0 0
    %966 = vmatprep.subr.bf16.mxu0 0
    %967 = vmatpush2.bf16.msra.mxu0 0
    %968 = vmatprep.mubr.bf16.mxu0 0
    %969 = vmatmul.mubr.bf16.gmra.mxu0 %v884
    %v970 = vpop.f32.mrf.mxu0
    %v971 = vadd.f32 0.0, %v970
    %v972 = vpop.f32.mrf.mxu0
    %v973 = vpop.f32.mrf.mxu0
    %v974 = vadd.f32 0.0, %v973
    %v975 = vpop.f32.mrf.mxu0
    %976 = vmatprep.mubr.bf16.mxu0 0
    %977 = vmatmul.mubr.bf16.gmra.mxu0 %v885
    %v978 = vpop.f32.mrf.mxu0
    %v979 = vadd.f32 0.0, %v978
    %v980 = vpop.f32.mrf.mxu0
    %v981 = vpop.f32.mrf.mxu0
    %v982 = vadd.f32 0.0, %v981
    %v983 = vpop.f32.mrf.mxu0
    %984 = vdwg.mxu0
    %v989 = vunpack.c.l.b16 %v793
    %v990 = vunpack.c.l.b16 %v794
    %v991 = vunpack.c.l.b16 %v796
    %v992 = vunpack.c.l.b16 %v797
    %v993 = vpack.c.b16 %v990, %v989
    %v994 = vpack.c.b16 %v992, %v991
    %v1013 = vunpack.c.l.b16 %v799
    %v1014 = vunpack.c.l.b16 %v800
    %v1015 = vunpack.c.l.b16 %v801
    %v1016 = vunpack.c.l.b16 %v802
    %v1017 = vunpack.c.l.b16 %v803
    %v1018 = vunpack.c.l.b16 %v804
    %v1019 = vunpack.c.l.b16 %v805
    %v1020 = vunpack.c.l.b16 %v806
    %v1021 = vunpack.c.l.b16 %v807
    %v1022 = vunpack.c.l.b16 %v808
    %v1023 = vunpack.c.l.b16 %v809
    %v1024 = vunpack.c.l.b16 %v810
    %v1025 = vunpack.c.l.b16 %v811
    %v1026 = vunpack.c.l.b16 %v812
    %v1027 = vunpack.c.l.b16 %v813
    %v1028 = vunpack.c.l.b16 %v814
    %v1029 = vpack.c.b16 %v1014, %v1013
    %v1030 = vpack.c.b16 %v1016, %v1015
    %v1031 = vpack.c.b16 %v1018, %v1017
    %v1032 = vpack.c.b16 %v1020, %v1019
    %v1033 = vpack.c.b16 %v1022, %v1021
    %v1034 = vpack.c.b16 %v1024, %v1023
    %v1035 = vpack.c.b16 %v1026, %v1025
    %v1036 = vpack.c.b16 %v1028, %v1027
    %1045 = vmatprep.subr.bf16.mxu0 0
    %1046 = vmatpush1.bf16.msra.mxu0 %v1036
    %1047 = vmatprep.subr.bf16.mxu0 0
    %1048 = vmatpush1.bf16.msra.mxu0 %v1035
    %1049 = vmatprep.subr.bf16.mxu0 0
    %1050 = vmatpush1.bf16.msra.mxu0 %v1034
    %1051 = vmatprep.subr.bf16.mxu0 0
    %1052 = vmatpush1.bf16.msra.mxu0 %v1033
    %1053 = vmatprep.subr.bf16.mxu0 0
    %1054 = vmatpush1.bf16.msra.mxu0 %v1032
    %1055 = vmatprep.subr.bf16.mxu0 0
    %1056 = vmatpush1.bf16.msra.mxu0 %v1031
    %1057 = vmatprep.subr.bf16.mxu0 0
    %1058 = vmatpush1.bf16.msra.mxu0 %v1030
    %1059 = vmatprep.subr.bf16.mxu0 0
    %1060 = vmatpush1.bf16.msra.mxu0 %v1029
    %1061 = vmatprep.subr.bf16.mxu0 0
    %1062 = vmatpush2.bf16.msra.mxu0 0
    %1063 = vmatprep.subr.bf16.mxu0 0
    %1064 = vmatpush2.bf16.msra.mxu0 0
    %1065 = vmatprep.subr.bf16.mxu0 0
    %1066 = vmatpush2.bf16.msra.mxu0 0
    %1067 = vmatprep.subr.bf16.mxu0 0
    %1068 = vmatpush2.bf16.msra.mxu0 0
    %1069 = vmatprep.subr.bf16.mxu0 0
    %1070 = vmatpush2.bf16.msra.mxu0 0
    %1071 = vmatprep.subr.bf16.mxu0 0
    %1072 = vmatpush2.bf16.msra.mxu0 0
    %1073 = vmatprep.subr.bf16.mxu0 0
    %1074 = vmatpush2.bf16.msra.mxu0 0
    %1075 = vmatprep.subr.bf16.mxu0 0
    %1076 = vmatpush2.bf16.msra.mxu0 0
    %1077 = vmatprep.mubr.bf16.mxu0 0
    %1078 = vmatmul.mubr.bf16.gmra.mxu0 %v993
    %v1079 = vpop.f32.mrf.mxu0
    %v1080 = vadd.f32 %v971, %v1079
    %v1081 = vpop.f32.mrf.mxu0
    %v1082 = vpop.f32.mrf.mxu0
    %v1083 = vadd.f32 %v974, %v1082
    %v1084 = vpop.f32.mrf.mxu0
    %1085 = vmatprep.mubr.bf16.mxu0 0
    %1086 = vmatmul.mubr.bf16.gmra.mxu0 %v994
    %v1087 = vpop.f32.mrf.mxu0
    %v1088 = vadd.f32 %v979, %v1087
    %v1089 = vpop.f32.mrf.mxu0
    %v1090 = vpop.f32.mrf.mxu0
    %v1091 = vadd.f32 %v982, %v1090
    %v1092 = vpop.f32.mrf.mxu0
    %1093 = vdwg.mxu0
    %v1096 = vrot.slane %v793, 5
    %v1097 = vrot.slane %v1096, 4
    %v1098 = vrot.slane %v794, 5
    %v1099 = vsel %vm372, %v1097, %v1098
    %v1100 = vrot.slane %v1098, 4
    %v1101 = vrot.slane %v795, 5
    %v1102 = vsel %vm372, %v1100, %v1101
    %v1103 = vrot.slane %v796, 5
    %v1104 = vrot.slane %v1103, 4
    %v1105 = vrot.slane %v797, 5
    %v1106 = vsel %vm372, %v1104, %v1105
    %v1107 = vrot.slane %v1105, 4
    %v1108 = vrot.slane %v798, 5
    %v1109 = vsel %vm372, %v1107, %v1108
    %s1110 = scalar_lea.vmem [#allocation4], 128
    %v1111 = vld [vmem:[%s1110] sm:$0xf]
    %v1112 = vld [vmem:[%s1110 + $0x4] sm:$0xf]
    %v1113 = vld [vmem:[%s1110 + $0x8] sm:$0xf]
    %v1114 = vld [vmem:[%s1110 + $0xc] sm:$0xf]
    %v1115 = vld [vmem:[%s1110 + $0x10] sm:$0xf]
    %v1116 = vld [vmem:[%s1110 + $0x14] sm:$0xf]
    %v1117 = vld [vmem:[%s1110 + $0x18] sm:$0xf]
    %v1118 = vld [vmem:[%s1110 + $0x1c] sm:$0xf]
    %v1119 = vld [vmem:[%s1110 + $0x20] sm:$0xf]
    %v1120 = vld [vmem:[%s1110 + $0x24] sm:$0xf]
    %v1121 = vld [vmem:[%s1110 + $0x28] sm:$0xf]
    %v1122 = vld [vmem:[%s1110 + $0x2c] sm:$0xf]
    %v1123 = vld [vmem:[%s1110 + $0x30] sm:$0xf]
    %v1124 = vld [vmem:[%s1110 + $0x34] sm:$0xf]
    %v1125 = vld [vmem:[%s1110 + $0x38] sm:$0xf]
    %v1126 = vld [vmem:[%s1110 + $0x3c] sm:$0xf]
    %v1127 = vunpack.c.l.b16 %v1099
    %v1128 = vunpack.c.l.b16 %v1102
    %v1129 = vunpack.c.l.b16 %v1106
    %v1130 = vunpack.c.l.b16 %v1109
    %v1131 = vpack.c.b16 %v1128, %v1127
    %v1132 = vpack.c.b16 %v1130, %v1129
    %v1151 = vunpack.c.l.b16 %v1111
    %v1152 = vunpack.c.l.b16 %v1112
    %v1153 = vunpack.c.l.b16 %v1113
    %v1154 = vunpack.c.l.b16 %v1114
    %v1155 = vunpack.c.l.b16 %v1115
    %v1156 = vunpack.c.l.b16 %v1116
    %v1157 = vunpack.c.l.b16 %v1117
    %v1158 = vunpack.c.l.b16 %v1118
    %v1159 = vunpack.c.l.b16 %v1119
    %v1160 = vunpack.c.l.b16 %v1120
    %v1161 = vunpack.c.l.b16 %v1121
    %v1162 = vunpack.c.l.b16 %v1122
    %v1163 = vunpack.c.l.b16 %v1123
    %v1164 = vunpack.c.l.b16 %v1124
    %v1165 = vunpack.c.l.b16 %v1125
    %v1166 = vunpack.c.l.b16 %v1126
    %v1167 = vpack.c.b16 %v1152, %v1151
    %v1168 = vpack.c.b16 %v1154, %v1153
    %v1169 = vpack.c.b16 %v1156, %v1155
    %v1170 = vpack.c.b16 %v1158, %v1157
    %v1171 = vpack.c.b16 %v1160, %v1159
    %v1172 = vpack.c.b16 %v1162, %v1161
    %v1173 = vpack.c.b16 %v1164, %v1163
    %v1174 = vpack.c.b16 %v1166, %v1165
    %1183 = vmatprep.subr.bf16.mxu0 0
    %1184 = vmatpush1.bf16.msra.mxu0 %v1174
    %1185 = vmatprep.subr.bf16.mxu0 0
    %1186 = vmatpush1.bf16.msra.mxu0 %v1173
    %1187 = vmatprep.subr.bf16.mxu0 0
    %1188 = vmatpush1.bf16.msra.mxu0 %v1172
    %1189 = vmatprep.subr.bf16.mxu0 0
    %1190 = vmatpush1.bf16.msra.mxu0 %v1171
    %1191 = vmatprep.subr.bf16.mxu0 0
    %1192 = vmatpush1.bf16.msra.mxu0 %v1170
    %1193 = vmatprep.subr.bf16.mxu0 0
    %1194 = vmatpush1.bf16.msra.mxu0 %v1169
    %1195 = vmatprep.subr.bf16.mxu0 0
    %1196 = vmatpush1.bf16.msra.mxu0 %v1168
    %1197 = vmatprep.subr.bf16.mxu0 0
    %1198 = vmatpush1.bf16.msra.mxu0 %v1167
    %1199 = vmatprep.subr.bf16.mxu0 0
    %1200 = vmatpush2.bf16.msra.mxu0 0
    %1201 = vmatprep.subr.bf16.mxu0 0
    %1202 = vmatpush2.bf16.msra.mxu0 0
    %1203 = vmatprep.subr.bf16.mxu0 0
    %1204 = vmatpush2.bf16.msra.mxu0 0
    %1205 = vmatprep.subr.bf16.mxu0 0
    %1206 = vmatpush2.bf16.msra.mxu0 0
    %1207 = vmatprep.subr.bf16.mxu0 0
    %1208 = vmatpush2.bf16.msra.mxu0 0
    %1209 = vmatprep.subr.bf16.mxu0 0
    %1210 = vmatpush2.bf16.msra.mxu0 0
    %1211 = vmatprep.subr.bf16.mxu0 0
    %1212 = vmatpush2.bf16.msra.mxu0 0
    %1213 = vmatprep.subr.bf16.mxu0 0
    %1214 = vmatpush2.bf16.msra.mxu0 0
    %1215 = vmatprep.mubr.bf16.mxu0 0
    %1216 = vmatmul.mubr.bf16.gmra.mxu0 %v1131
    %v1217 = vpop.f32.mrf.mxu0
    %v1218 = vadd.f32 0.0, %v1217
    %v1219 = vpop.f32.mrf.mxu0
    %v1220 = vpop.f32.mrf.mxu0
    %v1221 = vadd.f32 0.0, %v1220
    %v1222 = vpop.f32.mrf.mxu0
    %1223 = vmatprep.mubr.bf16.mxu0 0
    %1224 = vmatmul.mubr.bf16.gmra.mxu0 %v1132
    %v1225 = vpop.f32.mrf.mxu0
    %v1226 = vadd.f32 0.0, %v1225
    %v1227 = vpop.f32.mrf.mxu0
    %v1228 = vpop.f32.mrf.mxu0
    %v1229 = vadd.f32 0.0, %v1228
    %v1230 = vpop.f32.mrf.mxu0
    %1231 = vdwg.mxu0
    %v1232 = vadd.f32 %v1080, %v1218
    %v1233 = vadd.f32 %v1083, %v1221
    %v1234 = vadd.f32 %v1088, %v1226
    %v1235 = vadd.f32 %v1091, %v1229
    %v1236 = vadd.f32 %v1232, %v1233
    %v1237 = vadd.f32 %v1236, %v1234
    %v1238 = vadd.f32 %v1237, %v1235
    %v1239 = vrot.slane %v1238, 4
    %v1240 = vadd.f32 %v1238, %v1239
    %v1241 = vrot.slane %v1240, 2
    %v1242 = vadd.f32 %v1240, %v1241
    %v1243 = vrot.slane %v1242, 1
    %v1244 = vadd.f32 %v1242, %v1243
    %v1245 = vmul.f32 %v1232, %v1232
    %v1246 = vmul.f32 %v1233, %v1233
    %v1247 = vmul.f32 %v1234, %v1234
    %v1248 = vmul.f32 %v1235, %v1235
    %v1249 = vadd.f32 %v1245, %v1246
    %v1250 = vadd.f32 %v1249, %v1247
    %v1251 = vadd.f32 %v1250, %v1248
    %v1252 = vrot.slane %v1251, 4
    %v1253 = vadd.f32 %v1251, %v1252
    %v1254 = vrot.slane %v1253, 2
    %v1255 = vadd.f32 %v1253, %v1254
    %v1256 = vrot.slane %v1255, 1
    %v1257 = vadd.f32 %v1255, %v1256
    %v1258 = vsel %vm507, %v1244, %v1257
    %v1259 = vld [vmem:[%s3] sm:$0xff]
    %v1260 = vld [vmem:[%s3 + $0x8] sm:$0xff]
    %v1261 = vld [vmem:[%s3 + $0x10] sm:$0xff]
    %v1262 = vld [vmem:[%s3 + $0x18] sm:$0xff]
    %v1263 = vld [vmem:[%s3 + $0x20] sm:$0xff]
    %v1264 = vld [vmem:[%s3 + $0x28] sm:$0xff]
    %v1265 = vld [vmem:[%s3 + $0x30] sm:$0xff]
    %v1266 = vld [vmem:[%s3 + $0x38] sm:$0xff]
    %v1267 = vld [vmem:[%s3 + $0x40] sm:$0xff]
    %v1268 = vld [vmem:[%s3 + $0x48] sm:$0xff]
    %v1269 = vld [vmem:[%s3 + $0x50] sm:$0xff]
    %v1270 = vld [vmem:[%s3 + $0x58] sm:$0xff]
    %v1271 = vld [vmem:[%s3 + $0x60] sm:$0xff]
    %v1272 = vld [vmem:[%s3 + $0x68] sm:$0xff]
    %v1273 = vld [vmem:[%s3 + $0x70] sm:$0xff]
    %v1274 = vld [vmem:[%s3 + $0x78] sm:$0xff]
    %1275 = vmatprep.subr.mxu0 0.0
    %1276 = vmatpush1.msra.mxu0 %v1274
    %1277 = vmatprep.subr.mxu0 0.0
    %1278 = vmatpush1.msra.mxu0 %v1273
    %1279 = vmatprep.subr.mxu0 0.0
    %1280 = vmatpush1.msra.mxu0 %v1272
    %1281 = vmatprep.subr.mxu0 0.0
    %1282 = vmatpush1.msra.mxu0 %v1271
    %1283 = vmatprep.subr.mxu0 0.0
    %1284 = vmatpush1.msra.mxu0 %v1270
    %1285 = vmatprep.subr.mxu0 0.0
    %1286 = vmatpush1.msra.mxu0 %v1269
    %1287 = vmatprep.subr.mxu0 0.0
    %1288 = vmatpush1.msra.mxu0 %v1268
    %1289 = vmatprep.subr.mxu0 0.0
    %1290 = vmatpush1.msra.mxu0 %v1267
    %1291 = vmatprep.subr.mxu0 0.0
    %1292 = vmatpush1.msra.mxu0 %v1266
    %1293 = vmatprep.subr.mxu0 0.0
    %1294 = vmatpush1.msra.mxu0 %v1265
    %1295 = vmatprep.subr.mxu0 0.0
    %1296 = vmatpush1.msra.mxu0 %v1264
    %1297 = vmatprep.subr.mxu0 0.0
    %1298 = vmatpush1.msra.mxu0 %v1263
    %1299 = vmatprep.subr.mxu0 0.0
    %1300 = vmatpush1.msra.mxu0 %v1262
    %1301 = vmatprep.subr.mxu0 0.0
    %1302 = vmatpush1.msra.mxu0 %v1261
    %1303 = vmatprep.subr.mxu0 0.0
    %1304 = vmatpush1.msra.mxu0 %v1260
    %1305 = vmatprep.subr.mxu0 0.0
    %1306 = vmatpush1.msra.mxu0 %v1259
    %1307 = vmatprep.subr.mxu0 0.0
    %1308 = vmatpush2.msra.mxu0 0.0
    %1309 = vmatprep.subr.mxu0 0.0
    %1310 = vmatpush2.msra.mxu0 0.0
    %1311 = vmatprep.subr.mxu0 0.0
    %1312 = vmatpush2.msra.mxu0 0.0
    %1313 = vmatprep.subr.mxu0 0.0
    %1314 = vmatpush2.msra.mxu0 0.0
    %1315 = vmatprep.subr.mxu0 0.0
    %1316 = vmatpush2.msra.mxu0 0.0
    %1317 = vmatprep.subr.mxu0 0.0
    %1318 = vmatpush2.msra.mxu0 0.0
    %1319 = vmatprep.subr.mxu0 0.0
    %1320 = vmatpush2.msra.mxu0 0.0
    %1321 = vmatprep.subr.mxu0 0.0
    %1322 = vmatpush2.msra.mxu0 0.0
    %1323 = vmatprep.subr.mxu0 0.0
    %1324 = vmatpush2.msra.mxu0 0.0
    %1325 = vmatprep.subr.mxu0 0.0
    %1326 = vmatpush2.msra.mxu0 0.0
    %1327 = vmatprep.subr.mxu0 0.0
    %1328 = vmatpush2.msra.mxu0 0.0
    %1329 = vmatprep.subr.mxu0 0.0
    %1330 = vmatpush2.msra.mxu0 0.0
    %1331 = vmatprep.subr.mxu0 0.0
    %1332 = vmatpush2.msra.mxu0 0.0
    %1333 = vmatprep.subr.mxu0 0.0
    %1334 = vmatpush2.msra.mxu0 0.0
    %1335 = vmatprep.subr.mxu0 0.0
    %1336 = vmatpush2.msra.mxu0 0.0
    %1337 = vmatprep.subr.mxu0 0.0
    %1338 = vmatpush2.msra.mxu0 0.0
    %1339 = vmatprep.mubr.f32.mxu0 0.0
    %1340 = vmatmul.mubr.f32.gmra.mxu0 %v1258
    %v1341 = vpop.f32.mrf.mxu0
    %v1342 = vadd.f32 0.0, %v1341
    %v1343 = vpop.f32.mrf.mxu0
    %1344 = vdwg.mxu0
    %v1345 = vmul.f32 %v1342, 0.001953125
    %v1346 = vmul.f32 %v1345, %v1345
    %v1348 = vrot.slane %v1346, 7
    %v1350 = vsub.f32 %v1345, %v1348
    %v1351 = vld [vmem:[%s5] sm:$0x1]
    %v1352 = vadd.f32 %v1350, 1e-05
    %v1353 = vrsqrt.pop %v1352
    %v1355 = vrot.slane %v1353, 1
    %v1357 = vmul.f32 %v1351, %v1355
    %v1358 = vld [vmem:[%s5 + $0x1] sm:$0x1]
    %v1359 = vmul.f32 %v1345, %v1357
    %v1360 = vsub.f32 %v1358, %v1359
    %v1362 = vrot.slane %v1360, 7
    %v1364 = vsel %vm507, %v1357, %v1362
    %v1365 = vld [vmem:[%s4] sm:$0xff]
    %v1367 = vsel %vm616, %v1364, 0
    %1369 = vmatprep.subr.mxu0 0.0
    %1370 = vmatpush1.msra.mxu0 0.0
    %1371 = vmatprep.subr.mxu0 0.0
    %1372 = vmatpush1.msra.mxu0 0.0
    %1373 = vmatprep.subr.mxu0 0.0
    %1374 = vmatpush1.msra.mxu0 0.0
    %1375 = vmatprep.subr.mxu0 0.0
    %1376 = vmatpush1.msra.mxu0 0.0
    %1377 = vmatprep.subr.mxu0 0.0
    %1378 = vmatpush1.msra.mxu0 0.0
    %1379 = vmatprep.subr.mxu0 0.0
    %1380 = vmatpush1.msra.mxu0 0.0
    %1381 = vmatprep.subr.mxu0 0.0
    %1382 = vmatpush1.msra.mxu0 0.0
    %1383 = vmatprep.subr.mxu0 0.0
    %1384 = vmatpush1.msra.mxu0 0.0
    %1385 = vmatprep.subr.mxu0 0.0
    %1386 = vmatpush1.msra.mxu0 0.0
    %1387 = vmatprep.subr.mxu0 0.0
    %1388 = vmatpush1.msra.mxu0 0.0
    %1389 = vmatprep.subr.mxu0 0.0
    %1390 = vmatpush1.msra.mxu0 0.0
    %1391 = vmatprep.subr.mxu0 0.0
    %1392 = vmatpush1.msra.mxu0 0.0
    %1393 = vmatprep.subr.mxu0 0.0
    %1394 = vmatpush1.msra.mxu0 0.0
    %1395 = vmatprep.subr.mxu0 0.0
    %1396 = vmatpush1.msra.mxu0 0.0
    %1397 = vmatprep.subr.mxu0 0.0
    %1398 = vmatpush1.msra.mxu0 0.0
    %1399 = vmatprep.subr.mxu0 0.0
    %1400 = vmatpush1.msra.mxu0 %v1365
    %1401 = vmatprep.subr.mxu0 0.0
    %1402 = vmatpush2.msra.mxu0 0.0
    %1403 = vmatprep.subr.mxu0 0.0
    %1404 = vmatpush2.msra.mxu0 0.0
    %1405 = vmatprep.subr.mxu0 0.0
    %1406 = vmatpush2.msra.mxu0 0.0
    %1407 = vmatprep.subr.mxu0 0.0
    %1408 = vmatpush2.msra.mxu0 0.0
    %1409 = vmatprep.subr.mxu0 0.0
    %1410 = vmatpush2.msra.mxu0 0.0
    %1411 = vmatprep.subr.mxu0 0.0
    %1412 = vmatpush2.msra.mxu0 0.0
    %1413 = vmatprep.subr.mxu0 0.0
    %1414 = vmatpush2.msra.mxu0 0.0
    %1415 = vmatprep.subr.mxu0 0.0
    %1416 = vmatpush2.msra.mxu0 0.0
    %1417 = vmatprep.subr.mxu0 0.0
    %1418 = vmatpush2.msra.mxu0 0.0
    %1419 = vmatprep.subr.mxu0 0.0
    %1420 = vmatpush2.msra.mxu0 0.0
    %1421 = vmatprep.subr.mxu0 0.0
    %1422 = vmatpush2.msra.mxu0 0.0
    %1423 = vmatprep.subr.mxu0 0.0
    %1424 = vmatpush2.msra.mxu0 0.0
    %1425 = vmatprep.subr.mxu0 0.0
    %1426 = vmatpush2.msra.mxu0 0.0
    %1427 = vmatprep.subr.mxu0 0.0
    %1428 = vmatpush2.msra.mxu0 0.0
    %1429 = vmatprep.subr.mxu0 0.0
    %1430 = vmatpush2.msra.mxu0 0.0
    %1431 = vmatprep.subr.mxu0 0.0
    %1432 = vmatpush2.msra.mxu0 0.0
    %1433 = vmatprep.mubr.f32.mxu0 0.0
    %1434 = vmatmul.mubr.f32.gmra.mxu0 %v1367
    %v1435 = vpop.f32.mrf.mxu0
    %v1436 = vadd.f32 0.0, %v1435
    %v1437 = vpop.f32.mrf.mxu0
    %1438 = vdwg.mxu0
    %v1439 = vlaneseq
    %v1440 = vshrl.u32 %v1439, 7
    %v1441 = vsub.s32 0, %v1440
    %v1442 = vrot.slane %v1436, %v1441
    %v1443 = vmul.f32 %v1232, %v1442
    %v1444 = vmul.f32 %v1233, %v1442
    %v1445 = vmul.f32 %v1234, %v1442
    %v1446 = vmul.f32 %v1235, %v1442
    %v1447 = vlaneseq
    %v1448 = vshrl.u32 %v1447, 7
    %v1449 = vsub.s32 1, %v1448
    %v1450 = vrot.slane %v1436, %v1449
    %v1451 = vadd.f32 %v1443, %v1450
    %v1452 = vadd.f32 %v1444, %v1450
    %v1453 = vadd.f32 %v1445, %v1450
    %v1454 = vadd.f32 %v1446, %v1450
    %v1455 = vmax.f32 %v1451, 0.0
    %v1456 = vmax.f32 %v1452, 0.0
    %v1457 = vmax.f32 %v1453, 0.0
    %v1458 = vmax.f32 %v1454, 0.0
    %1459 = vst [vmem:[#allocation7] sm:$0xff] %v1455
    %1460 = vst [vmem:[#allocation7 + $0x8] sm:$0xff] %v1456
    %1461 = vst [vmem:[#allocation7 + $0x10] sm:$0xff] %v1457
    %1462 = vst [vmem:[#allocation7 + $0x18] sm:$0xff] %v1458
    // Predicated region
    $region30: #{tpu_custom_call.1} parent=1 // pred_check
      _
    $region31: #{tpu_custom_call.1} parent=1 // pred_check_branch
      %1464 = sbr.rel (0) target = $region33
    $region32: #{tpu_custom_call.1} parent=1 // pred_region
      %s1466 = ssub.s32 512, 512
      %1467 = vsyncadd [#allocation6], %s1466
      %s1468 = sshll.u32 [#allocation7], 4
      %s1469 = int_to_ptr.vmem [resolvable:$true] %s1468
      %1474 = dma.vmem_to_hbm [thread:$0]  %s1469, 512, %s6, [#allocation6], 128, 128, 8
    $region33: #{tpu_custom_call.1} parent=1 // pred_fallthru
      _
    // Predicated region
    $region34: #{tpu_custom_call.1} parent=1 // pred_check
      _
    $region35: #{tpu_custom_call.1} parent=1 // pred_check_branch
      %1476 = sbr.rel (0) target = $region37
    $region36: #{tpu_custom_call.1} parent=1 // pred_region
      %1477 = dma.done [#allocation6], 512
    $region37: #{tpu_custom_call.1} parent=1 // pred_fallthru
      _
    %1478 = vsyncpa [#allocation5], 1
    %1479 = vsyncpa [#allocation6], 1

</llo_original>
